<compile_context>
chip_gen: v7x
topology: tpu7x:2x2x1
jax: 0.10.0
libtpu: 0.0.40
codegen_flags: <defaults>
</compile_context>

<pallas_src>
import math

import jax
import jax.numpy as jnp
from jax.experimental import pallas as pl
from jax.experimental.pallas import tpu as pltpu


def _round_up(n, m):
    return ((n + m - 1) // m) * m


def _mlp_kernel(x_ref, w1_ref, b1_ref, w2_ref, b2_ref, o_ref):
    # x_ref : (TM, D)  bf16  -- token tile (cast once in the wrapper)
    # w1_ref: (D, H)   bf16  -- W1^T, VMEM-resident
    # b1_ref: (1, H)   f32
    # w2_ref: (H, D)   bf16  -- W2^T, VMEM-resident
    # b2_ref: (1, D)   f32
    # o_ref : (TM, D)  f32
    # First matmul: bf16 MXU inputs, f32 accumulation.
    h = jnp.dot(x_ref[...], w1_ref[...], preferred_element_type=jnp.float32)
    # Bias + ReLU on the VPU in f32.
    h = jnp.maximum(h + b1_ref[...], 0.0)
    # TODO(synk): training-mode Dropout(p=0.1) (pltpu.prng_seed + random mask +
    # 1/(1-p) scaling); eval-mode forward is identity.
    # Second matmul: cast the hidden to bf16 only right before the dot.
    y = jnp.dot(h.astype(jnp.bfloat16), w2_ref[...],
                preferred_element_type=jnp.float32)
    o_ref[...] = (y + b2_ref[...]).astype(o_ref.dtype)


def mlp_forward(x, w1, b1, w2, b2, *, tile_tokens=512):
    """Fused MLP forward (eval mode).

    x : (..., n_units) float32
    w1: (hidden, n_units) float32   (PyTorch nn.Linear weight layout)
    b1: (hidden,)         float32
    w2: (n_units, hidden) float32
    b2: (n_units,)        float32
    Returns: same shape and dtype as x.
    """
    orig_shape = x.shape
    D = orig_shape[-1]
    H = w1.shape[0]
    assert w1.shape == (H, D)
    assert w2.shape == (D, H)

    T = 1
    for s in orig_shape[:-1]:
        T *= int(s)

    # Activations in bf16 (MXU-native; halves x-tile DMA). Output stays f32.
    x2 = x.reshape(T, D).astype(jnp.bfloat16)

    # One-time weight transposes + bf16 casts (outside the grid).
    w1t = jnp.transpose(w1).astype(jnp.bfloat16)   # (D, H)
    w2t = jnp.transpose(w2).astype(jnp.bfloat16)   # (H, D)
    b1r = b1.reshape(1, H).astype(jnp.float32)
    b2r = b2.reshape(1, D).astype(jnp.float32)

    # Large token tile, clamped to the (8-aligned) problem size.
    tm = min(tile_tokens, _round_up(T, 8))
    grid = (pl.cdiv(T, tm),)

    out_flat = pl.pallas_call(
        _mlp_kernel,
        out_shape=jax.ShapeDtypeStruct((T, D), x.dtype),
        grid_spec=pltpu.PrefetchScalarGridSpec(
            num_scalar_prefetch=0,
            grid=grid,
            in_specs=[
                # token tile of activations
                pl.BlockSpec((tm, D), lambda i: (i, 0)),
                # weights / biases: constant index_map -> resident in VMEM
                pl.BlockSpec((D, H), lambda i: (0, 0)),
                pl.BlockSpec((1, H), lambda i: (0, 0)),
                pl.BlockSpec((H, D), lambda i: (0, 0)),
                pl.BlockSpec((1, D), lambda i: (0, 0)),
            ],
            out_specs=pl.BlockSpec((tm, D), lambda i: (i, 0)),
        ),
        compiler_params=pltpu.CompilerParams(
            dimension_semantics=("parallel",),
            vmem_limit_bytes=32 * 1024 * 1024,
        ),
    )(x2, w1t, b1r, w2t, b2r)

    return out_flat.reshape(orig_shape)


def _reference(x, w1, b1, w2, b2):
    """Eval-mode f32 reference (dropout = identity), high-precision matmuls."""
    hi = jax.lax.Precision.HIGHEST
    D = x.shape[-1]
    h = jnp.maximum(jnp.dot(x.reshape(-1, D), w1.T, precision=hi) + b1, 0.0)
    return (jnp.dot(h, w2.T, precision=hi) + b2).reshape(x.shape)


if __name__ == "__main__":
    # Small shapes consistent with the module: batch=2, seq=8, n_units=32, hidden=2048.
    B, S, n_units, hidden = 2, 8, 32, 2048

    key = jax.random.PRNGKey(0)
    k_x, k_w1, k_b1, k_w2, k_b2, k_x2 = jax.random.split(key, 6)

    x = jax.random.normal(k_x, (B, S, n_units), dtype=jnp.float32)

    # PyTorch nn.Linear default init: U(-1/sqrt(fan_in), 1/sqrt(fan_in)).
    lim1 = 1.0 / math.sqrt(n_units)
    w1 = jax.random.uniform(k_w1, (hidden, n_units), jnp.float32, -lim1, lim1)
    b1 = jax.random.uniform(k_b1, (hidden,), jnp.float32, -lim1, lim1)
    lim2 = 1.0 / math.sqrt(hidden)
    w2 = jax.random.uniform(k_w2, (n_units, hidden), jnp.float32, -lim2, lim2)
    b2 = jax.random.uniform(k_b2, (n_units,), jnp.float32, -lim2, lim2)

    # --- check 1: tiny demo shape (grid=(1,)) -------------------------------
    out = mlp_forward(x, w1, b1, w2, b2)
    out = jax.block_until_ready(out)
    ref = _reference(x, w1, b1, w2, b2)
    assert out.shape == (B, S, n_units)
    # bf16 MXU inputs (f32 accumulation) => relax tolerance vs. the f32 reference.
    assert jnp.allclose(out, ref, atol=1e-2, rtol=1e-2), (
        float(jnp.max(jnp.abs(out - ref))))

    # --- check 2: larger token count -> multi-tile grid + non-divisible tail ---
    # T = 600 tokens, tm = 512 -> grid = (2,), exercising the parallel axis
    # (both TCs on v7x) and the padded/masked tail tile.
    xl = jax.random.normal(k_x2, (600, n_units), dtype=jnp.float32)
    out_l = jax.block_until_ready(mlp_forward(xl, w1, b1, w2, b2))
    ref_l = _reference(xl, w1, b1, w2, b2)
    assert out_l.shape == xl.shape
    assert jnp.allclose(out_l, ref_l, atol=1e-2, rtol=1e-2), (
        float(jnp.max(jnp.abs(out_l - ref_l))))

    print("KERNEL_OK")
</pallas_src>

<mosaic_0001>
module attributes {stable_mosaic.version = 11 : i64} {
  func.func @_mlp_kernel(%arg0: i32, %arg1: memref<16x32xbf16, #tpu.memory_space<vmem>>, %arg2: memref<32x2048xbf16, #tpu.memory_space<vmem>>, %arg3: memref<1x2048xf32, #tpu.memory_space<vmem>>, %arg4: memref<2048x32xbf16, #tpu.memory_space<vmem>>, %arg5: memref<1x32xf32, #tpu.memory_space<vmem>>, %arg6: memref<16x32xf32, #tpu.memory_space<vmem>>) attributes {dimension_semantics = [#tpu.dimension_semantics<parallel>], iteration_bounds = array<i64: 1>, scalar_prefetch = 0 : i64, scratch_operands = 0 : i64, tpu.core_type = #tpu.core_type<tc>, window_params = [{transform_indices = @transform_0, window_bounds = array<i64: 16, 32>}, {pipeline_mode = #tpu.pipeline_mode<synchronous>, transform_indices = @transform_1, window_bounds = array<i64: 32, 2048>}, {pipeline_mode = #tpu.pipeline_mode<synchronous>, transform_indices = @transform_2, window_bounds = array<i64: 1, 2048>}, {pipeline_mode = #tpu.pipeline_mode<synchronous>, transform_indices = @transform_3, window_bounds = array<i64: 2048, 32>}, {pipeline_mode = #tpu.pipeline_mode<synchronous>, transform_indices = @transform_4, window_bounds = array<i64: 1, 32>}, {transform_indices = @transform_5, window_bounds = array<i64: 16, 32>}]} {
    %c0 = arith.constant 0 : index
    %c0_0 = arith.constant 0 : index
    %0 = vector.load %arg1[%c0, %c0_0] : memref<16x32xbf16, #tpu.memory_space<vmem>>, vector<16x32xbf16>
    %c0_1 = arith.constant 0 : index
    %c0_2 = arith.constant 0 : index
    %1 = vector.load %arg2[%c0_1, %c0_2] : memref<32x2048xbf16, #tpu.memory_space<vmem>>, vector<32x2048xbf16>
    %cst = arith.constant dense<0.000000e+00> : vector<16x2048xf32>
    %2 = tpu.matmul %0, %1, %cst {dimension_numbers = #tpu.dot_dimension_numbers<[1], [0], [0], [1], [0, 0, 1, 1], [], []>} : vector<16x32xbf16>, vector<32x2048xbf16>, vector<16x2048xf32> -> vector<16x2048xf32>
    %c0_3 = arith.constant 0 : index
    %c0_4 = arith.constant 0 : index
    %3 = vector.load %arg3[%c0_3, %c0_4] : memref<1x2048xf32, #tpu.memory_space<vmem>>, vector<1x2048xf32>
    %4 = vector.broadcast %3 : vector<1x2048xf32> to vector<16x2048xf32>
    %5 = arith.addf %2, %4 : vector<16x2048xf32>
    %cst_5 = arith.constant 0.000000e+00 : f32
    %6 = vector.broadcast %cst_5 : f32 to vector<16x2048xf32>
    %7 = arith.maximumf %5, %6 : vector<16x2048xf32>
    %8 = arith.truncf %7 : vector<16x2048xf32> to vector<16x2048xbf16>
    %c0_6 = arith.constant 0 : index
    %c0_7 = arith.constant 0 : index
    %9 = vector.load %arg4[%c0_6, %c0_7] : memref<2048x32xbf16, #tpu.memory_space<vmem>>, vector<2048x32xbf16>
    %cst_8 = arith.constant dense<0.000000e+00> : vector<16x32xf32>
    %10 = tpu.matmul %8, %9, %cst_8 {dimension_numbers = #tpu.dot_dimension_numbers<[1], [0], [0], [1], [0, 0, 1, 1], [], []>} : vector<16x2048xbf16>, vector<2048x32xbf16>, vector<16x32xf32> -> vector<16x32xf32>
    %c0_9 = arith.constant 0 : index
    %c0_10 = arith.constant 0 : index
    %11 = vector.load %arg5[%c0_9, %c0_10] : memref<1x32xf32, #tpu.memory_space<vmem>>, vector<1x32xf32>
    %12 = vector.broadcast %11 : vector<1x32xf32> to vector<16x32xf32>
    %13 = arith.addf %10, %12 : vector<16x32xf32>
    %c0_11 = arith.constant 0 : index
    %c0_12 = arith.constant 0 : index
    %14 = vector.load %arg6[%c0_11, %c0_12] : memref<16x32xf32, #tpu.memory_space<vmem>>, vector<16x32xf32>
    tpu.vector_store %arg6[%c0_11, %c0_12], %13 {strides = array<i32>} : memref<16x32xf32, #tpu.memory_space<vmem>>, vector<16x32xf32>,
    return
  }
  func.func @transform_0(%arg0: i32) -> (i32, i32) {
    %c0_i32 = arith.constant 0 : i32
    %c0_i32_0 = arith.constant 0 : i32
    return %arg0, %c0_i32 : i32, i32
  }
  func.func @transform_1(%arg0: i32) -> (i32, i32) {
    %c0_i32 = arith.constant 0 : i32
    %c0_i32_0 = arith.constant 0 : i32
    %c0_i32_1 = arith.constant 0 : i32
    return %c0_i32, %c0_i32_0 : i32, i32
  }
  func.func @transform_2(%arg0: i32) -> (i32, i32) {
    %c0_i32 = arith.constant 0 : i32
    %c0_i32_0 = arith.constant 0 : i32
    %c0_i32_1 = arith.constant 0 : i32
    return %c0_i32, %c0_i32_0 : i32, i32
  }
  func.func @transform_3(%arg0: i32) -> (i32, i32) {
    %c0_i32 = arith.constant 0 : i32
    %c0_i32_0 = arith.constant 0 : i32
    %c0_i32_1 = arith.constant 0 : i32
    return %c0_i32, %c0_i32_0 : i32, i32
  }
  func.func @transform_4(%arg0: i32) -> (i32, i32) {
    %c0_i32 = arith.constant 0 : i32
    %c0_i32_0 = arith.constant 0 : i32
    %c0_i32_1 = arith.constant 0 : i32
    return %c0_i32, %c0_i32_0 : i32, i32
  }
  func.func @transform_5(%arg0: i32) -> (i32, i32) {
    %c0_i32 = arith.constant 0 : i32
    %c0_i32_0 = arith.constant 0 : i32
    return %arg0, %c0_i32 : i32, i32
  }
}

</mosaic_0001>

<llo_original>
// kernel: tpu_custom_call.1
$region0: #{tpu_custom_call.1}
  #allocation0 [shape = 'u32[]', space=smem, size = 0x4, offset = 0x4, fixed_abs, tag = 'smem constant byte address 0x4 - core index']
  #allocation1 [shape = 'u32[144,128]{1,0:T(1,128)}', space=vmem, size = 0x12000, scoped, tag = 'internal scratch']
  %s0 = inlined_call_operand.vmem [shape: bf16[16,32], index: 0, kind: input, shape index: {}]
  %s1 = inlined_call_operand.vmem [shape: bf16[32,2048], index: 1, kind: input, shape index: {}]
  %s2 = inlined_call_operand.vmem [shape: f32[1,2048], index: 2, kind: input, shape index: {}]
  %s3 = inlined_call_operand.vmem [shape: bf16[2048,32], index: 3, kind: input, shape index: {}]
  %s4 = inlined_call_operand.vmem [shape: f32[1,32], index: 4, kind: input, shape index: {}]
  %s5 = inlined_call_operand.hbm [shape: f32[16,32], index: 5, kind: output, shape index: {}]
  %s6 = sld [smem:[#allocation0]]
  $region30: #{tpu_custom_call.1} parent=0
    _
  %s8 = ssub.s32 1, %s6
  %s9 = scalar_select 0, %s8, %s6
  $region1: #{tpu_custom_call.1} parent=0
    #allocation2 [shape = 'u8[8192]{0}', space=vmem, size = 0x2000, scoped, tag = 'output window, operand 0, single buffered']
    #allocation3 [shape = 's32[1]{0}', space=sflag, size = 0x4, scoped, tag = 'scoped memory for tpu_custom_call.1']
    %10 = vsyncpa [#allocation3], 0
    // Predicated region
    $region2: #{tpu_custom_call.1} parent=1 // pred_check
      _
    $region3: #{tpu_custom_call.1} parent=1 // pred_check_branch
      %12 = sbr.rel (0) target = $region5
    $region4: #{tpu_custom_call.1} parent=1 // pred_region
      _
    $region5: #{tpu_custom_call.1} parent=1 // pred_fallthru
      _
    // Predicated region
    $region6: #{tpu_custom_call.1} parent=1 // pred_check
      _
    $region7: #{tpu_custom_call.1} parent=1 // pred_check_branch
      %14 = sbr.rel (0) target = $region9
    $region8: #{tpu_custom_call.1} parent=1 // pred_region
      _
    $region9: #{tpu_custom_call.1} parent=1 // pred_fallthru
      _
    // Predicated region
    $region10: #{tpu_custom_call.1} parent=1 // pred_check
      _
    $region11: #{tpu_custom_call.1} parent=1 // pred_check_branch
      %16 = sbr.rel (0) target = $region13
    $region12: #{tpu_custom_call.1} parent=1 // pred_region
      _
    $region13: #{tpu_custom_call.1} parent=1 // pred_fallthru
      _
    // Predicated region
    $region14: #{tpu_custom_call.1} parent=1 // pred_check
      _
    $region15: #{tpu_custom_call.1} parent=1 // pred_check_branch
      %18 = sbr.rel (0) target = $region17
    $region16: #{tpu_custom_call.1} parent=1 // pred_region
      _
    $region17: #{tpu_custom_call.1} parent=1 // pred_fallthru
      _
    // Predicated region
    $region18: #{tpu_custom_call.1} parent=1 // pred_check
      _
    $region19: #{tpu_custom_call.1} parent=1 // pred_check_branch
      %20 = sbr.rel (0) target = $region21
    $region20: #{tpu_custom_call.1} parent=1 // pred_region
      _
    $region21: #{tpu_custom_call.1} parent=1 // pred_fallthru
      _
    %v22 = vld [vmem:[%s0] sm:$0xf]
    %v23 = vld [vmem:[%s0 + $0x4] sm:$0xf]
    %v24 = vld [vmem:[%s1] sm:$0xff]
    %v25 = vld [vmem:[%s1 + $0x8] sm:$0xff]
    %v26 = vld [vmem:[%s1 + $0x10] sm:$0xff]
    %v27 = vld [vmem:[%s1 + $0x18] sm:$0xff]
    %v28 = vld [vmem:[%s1 + $0x20] sm:$0xff]
    %v29 = vld [vmem:[%s1 + $0x28] sm:$0xff]
    %v30 = vld [vmem:[%s1 + $0x30] sm:$0xff]
    %v31 = vld [vmem:[%s1 + $0x38] sm:$0xff]
    %v32 = vld [vmem:[%s1 + $0x40] sm:$0xff]
    %v33 = vld [vmem:[%s1 + $0x48] sm:$0xff]
    %v34 = vld [vmem:[%s1 + $0x50] sm:$0xff]
    %v35 = vld [vmem:[%s1 + $0x58] sm:$0xff]
    %v36 = vld [vmem:[%s1 + $0x60] sm:$0xff]
    %v37 = vld [vmem:[%s1 + $0x68] sm:$0xff]
    %v38 = vld [vmem:[%s1 + $0x70] sm:$0xff]
    %v39 = vld [vmem:[%s1 + $0x78] sm:$0xff]
    %v40 = vld [vmem:[%s1 + $0x80] sm:$0xff]
    %v41 = vld [vmem:[%s1 + $0x88] sm:$0xff]
    %v42 = vld [vmem:[%s1 + $0x90] sm:$0xff]
    %v43 = vld [vmem:[%s1 + $0x98] sm:$0xff]
    %v44 = vld [vmem:[%s1 + $0xa0] sm:$0xff]
    %v45 = vld [vmem:[%s1 + $0xa8] sm:$0xff]
    %v46 = vld [vmem:[%s1 + $0xb0] sm:$0xff]
    %v47 = vld [vmem:[%s1 + $0xb8] sm:$0xff]
    %v48 = vld [vmem:[%s1 + $0xc0] sm:$0xff]
    %v49 = vld [vmem:[%s1 + $0xc8] sm:$0xff]
    %v50 = vld [vmem:[%s1 + $0xd0] sm:$0xff]
    %v51 = vld [vmem:[%s1 + $0xd8] sm:$0xff]
    %v52 = vld [vmem:[%s1 + $0xe0] sm:$0xff]
    %v53 = vld [vmem:[%s1 + $0xe8] sm:$0xff]
    %v54 = vld [vmem:[%s1 + $0xf0] sm:$0xff]
    %v55 = vld [vmem:[%s1 + $0xf8] sm:$0xff]
    %v56 = vld [vmem:[%s2] sm:$0xff]
    %v57 = vld [vmem:[%s2 + $0x8] sm:$0xff]
    %v60 = vlaneseq
    %v61 = vshrl.u32 %v60, 7
    %v62 = vsub.s32 0, %v61
    %v63 = vrot.slane %v56, %v62
    %v64 = vlaneseq
    %v65 = vshrl.u32 %v64, 7
    %v66 = vsub.s32 1, %v65
    %v67 = vrot.slane %v56, %v66
    %v68 = vlaneseq
    %v69 = vshrl.u32 %v68, 7
    %v70 = vsub.s32 2, %v69
    %v71 = vrot.slane %v56, %v70
    %v72 = vlaneseq
    %v73 = vshrl.u32 %v72, 7
    %v74 = vsub.s32 3, %v73
    %v75 = vrot.slane %v56, %v74
    %v76 = vlaneseq
    %v77 = vshrl.u32 %v76, 7
    %v78 = vsub.s32 4, %v77
    %v79 = vrot.slane %v56, %v78
    %v80 = vlaneseq
    %v81 = vshrl.u32 %v80, 7
    %v82 = vsub.s32 5, %v81
    %v83 = vrot.slane %v56, %v82
    %v84 = vlaneseq
    %v85 = vshrl.u32 %v84, 7
    %v86 = vsub.s32 6, %v85
    %v87 = vrot.slane %v56, %v86
    %v88 = vlaneseq
    %v89 = vshrl.u32 %v88, 7
    %v90 = vsub.s32 7, %v89
    %v91 = vrot.slane %v56, %v90
    %v92 = vlaneseq
    %v93 = vshrl.u32 %v92, 7
    %v94 = vsub.s32 0, %v93
    %v95 = vrot.slane %v57, %v94
    %v96 = vlaneseq
    %v97 = vshrl.u32 %v96, 7
    %v98 = vsub.s32 1, %v97
    %v99 = vrot.slane %v57, %v98
    %v100 = vlaneseq
    %v101 = vshrl.u32 %v100, 7
    %v102 = vsub.s32 2, %v101
    %v103 = vrot.slane %v57, %v102
    %v104 = vlaneseq
    %v105 = vshrl.u32 %v104, 7
    %v106 = vsub.s32 3, %v105
    %v107 = vrot.slane %v57, %v106
    %v108 = vlaneseq
    %v109 = vshrl.u32 %v108, 7
    %v110 = vsub.s32 4, %v109
    %v111 = vrot.slane %v57, %v110
    %v112 = vlaneseq
    %v113 = vshrl.u32 %v112, 7
    %v114 = vsub.s32 5, %v113
    %v115 = vrot.slane %v57, %v114
    %v116 = vlaneseq
    %v117 = vshrl.u32 %v116, 7
    %v118 = vsub.s32 6, %v117
    %v119 = vrot.slane %v57, %v118
    %v120 = vlaneseq
    %v121 = vshrl.u32 %v120, 7
    %v122 = vsub.s32 7, %v121
    %v123 = vrot.slane %v57, %v122
    %v142 = vunpack.c.l.b16 %v22
    %v143 = vunpack.c.l.b16 %v23
    %v144 = vpack.c.b16 %v143, %v142
    %v177 = vunpack.c.l.b16 %v24
    %v178 = vunpack.c.h.b16 %v24
    %v179 = vunpack.c.l.b16 %v25
    %v180 = vunpack.c.h.b16 %v25
    %v181 = vunpack.c.l.b16 %v26
    %v182 = vunpack.c.h.b16 %v26
    %v183 = vunpack.c.l.b16 %v27
    %v184 = vunpack.c.h.b16 %v27
    %v185 = vunpack.c.l.b16 %v28
    %v186 = vunpack.c.h.b16 %v28
    %v187 = vunpack.c.l.b16 %v29
    %v188 = vunpack.c.h.b16 %v29
    %v189 = vunpack.c.l.b16 %v30
    %v190 = vunpack.c.h.b16 %v30
    %v191 = vunpack.c.l.b16 %v31
    %v192 = vunpack.c.h.b16 %v31
    %v193 = vunpack.c.l.b16 %v32
    %v194 = vunpack.c.h.b16 %v32
    %v195 = vunpack.c.l.b16 %v33
    %v196 = vunpack.c.h.b16 %v33
    %v197 = vunpack.c.l.b16 %v34
    %v198 = vunpack.c.h.b16 %v34
    %v199 = vunpack.c.l.b16 %v35
    %v200 = vunpack.c.h.b16 %v35
    %v201 = vunpack.c.l.b16 %v36
    %v202 = vunpack.c.h.b16 %v36
    %v203 = vunpack.c.l.b16 %v37
    %v204 = vunpack.c.h.b16 %v37
    %v205 = vunpack.c.l.b16 %v38
    %v206 = vunpack.c.h.b16 %v38
    %v207 = vunpack.c.l.b16 %v39
    %v208 = vunpack.c.h.b16 %v39
    %v209 = vunpack.c.l.b16 %v40
    %v210 = vunpack.c.h.b16 %v40
    %v211 = vunpack.c.l.b16 %v41
    %v212 = vunpack.c.h.b16 %v41
    %v213 = vunpack.c.l.b16 %v42
    %v214 = vunpack.c.h.b16 %v42
    %v215 = vunpack.c.l.b16 %v43
    %v216 = vunpack.c.h.b16 %v43
    %v217 = vunpack.c.l.b16 %v44
    %v218 = vunpack.c.h.b16 %v44
    %v219 = vunpack.c.l.b16 %v45
    %v220 = vunpack.c.h.b16 %v45
    %v221 = vunpack.c.l.b16 %v46
    %v222 = vunpack.c.h.b16 %v46
    %v223 = vunpack.c.l.b16 %v47
    %v224 = vunpack.c.h.b16 %v47
    %v225 = vunpack.c.l.b16 %v48
    %v226 = vunpack.c.h.b16 %v48
    %v227 = vunpack.c.l.b16 %v49
    %v228 = vunpack.c.h.b16 %v49
    %v229 = vunpack.c.l.b16 %v50
    %v230 = vunpack.c.h.b16 %v50
    %v231 = vunpack.c.l.b16 %v51
    %v232 = vunpack.c.h.b16 %v51
    %v233 = vunpack.c.l.b16 %v52
    %v234 = vunpack.c.h.b16 %v52
    %v235 = vunpack.c.l.b16 %v53
    %v236 = vunpack.c.h.b16 %v53
    %v237 = vunpack.c.l.b16 %v54
    %v238 = vunpack.c.h.b16 %v54
    %v239 = vunpack.c.l.b16 %v55
    %v240 = vunpack.c.h.b16 %v55
    %v241 = vpack.c.b16 %v193, %v177
    %v242 = vpack.c.b16 %v194, %v178
    %v243 = vpack.c.b16 %v195, %v179
    %v244 = vpack.c.b16 %v196, %v180
    %v245 = vpack.c.b16 %v197, %v181
    %v246 = vpack.c.b16 %v198, %v182
    %v247 = vpack.c.b16 %v199, %v183
    %v248 = vpack.c.b16 %v200, %v184
    %v249 = vpack.c.b16 %v201, %v185
    %v250 = vpack.c.b16 %v202, %v186
    %v251 = vpack.c.b16 %v203, %v187
    %v252 = vpack.c.b16 %v204, %v188
    %v253 = vpack.c.b16 %v205, %v189
    %v254 = vpack.c.b16 %v206, %v190
    %v255 = vpack.c.b16 %v207, %v191
    %v256 = vpack.c.b16 %v208, %v192
    %v257 = vpack.c.b16 %v225, %v209
    %v258 = vpack.c.b16 %v226, %v210
    %v259 = vpack.c.b16 %v227, %v211
    %v260 = vpack.c.b16 %v228, %v212
    %v261 = vpack.c.b16 %v229, %v213
    %v262 = vpack.c.b16 %v230, %v214
    %v263 = vpack.c.b16 %v231, %v215
    %v264 = vpack.c.b16 %v232, %v216
    %v265 = vpack.c.b16 %v233, %v217
    %v266 = vpack.c.b16 %v234, %v218
    %v267 = vpack.c.b16 %v235, %v219
    %v268 = vpack.c.b16 %v236, %v220
    %v269 = vpack.c.b16 %v237, %v221
    %v270 = vpack.c.b16 %v238, %v222
    %v271 = vpack.c.b16 %v239, %v223
    %v272 = vpack.c.b16 %v240, %v224
    %vm305 = vcmask 261120
    %v307 = vsel %vm305, %v144, 0
    %309 = vmatprep.subr.bf16.mxu0 %v242
    %310 = vmatpush1.bf16.msra.mxu0 %v241
    %311 = vmatprep.subr.bf16.mxu0 %v258
    %312 = vmatpush1.bf16.msra.mxu0 %v257
    %313 = vmatprep.subr.bf16.mxu0 0
    %314 = vmatpush1.bf16.msra.mxu0 0
    %315 = vmatprep.subr.bf16.mxu0 0
    %316 = vmatpush1.bf16.msra.mxu0 0
    %317 = vmatprep.subr.bf16.mxu0 0
    %318 = vmatpush1.bf16.msra.mxu0 0
    %319 = vmatprep.subr.bf16.mxu0 0
    %320 = vmatpush1.bf16.msra.mxu0 0
    %321 = vmatprep.subr.bf16.mxu0 0
    %322 = vmatpush1.bf16.msra.mxu0 0
    %323 = vmatprep.subr.bf16.mxu0 0
    %324 = vmatpush1.bf16.msra.mxu0 0
    %325 = vmatprep.subr.bf16.mxu0 0
    %326 = vmatpush1.bf16.msra.mxu0 0
    %327 = vmatprep.subr.bf16.mxu0 0
    %328 = vmatpush1.bf16.msra.mxu0 0
    %329 = vmatprep.subr.bf16.mxu0 0
    %330 = vmatpush1.bf16.msra.mxu0 0
    %331 = vmatprep.subr.bf16.mxu0 0
    %332 = vmatpush1.bf16.msra.mxu0 0
    %333 = vmatprep.subr.bf16.mxu0 0
    %334 = vmatpush1.bf16.msra.mxu0 0
    %335 = vmatprep.subr.bf16.mxu0 0
    %336 = vmatpush1.bf16.msra.mxu0 0
    %337 = vmatprep.subr.bf16.mxu0 0
    %338 = vmatpush1.bf16.msra.mxu0 0
    %339 = vmatprep.subr.bf16.mxu0 0
    %340 = vmatpush1.bf16.msra.mxu0 0
    %341 = vmatprep.mubr.bf16.mxu0 0
    %342 = vmatmul.mubr.bf16.gmra.mrb[0].mxu0 %v307
    %v343 = vpop.f32.mrb[0].mxu0
    %v344 = vadd.f32 %v63, %v343
    %v345 = vpop.f32.mrb[0].mxu0
    %v346 = vadd.f32 %v67, %v345
    %v347 = vpop.f32.mrb[0].mxu0
    %v348 = vadd.f32 %v63, %v347
    %v349 = vpop.f32.mrb[0].mxu0
    %v350 = vadd.f32 %v67, %v349
    %351 = vdwg.mxu0
    %352 = vmatprep.subr.bf16.mxu0 %v244
    %353 = vmatpush1.bf16.msra.mxu0 %v243
    %354 = vmatprep.subr.bf16.mxu0 %v260
    %355 = vmatpush1.bf16.msra.mxu0 %v259
    %356 = vmatprep.subr.bf16.mxu0 0
    %357 = vmatpush1.bf16.msra.mxu0 0
    %358 = vmatprep.subr.bf16.mxu0 0
    %359 = vmatpush1.bf16.msra.mxu0 0
    %360 = vmatprep.subr.bf16.mxu0 0
    %361 = vmatpush1.bf16.msra.mxu0 0
    %362 = vmatprep.subr.bf16.mxu0 0
    %363 = vmatpush1.bf16.msra.mxu0 0
    %364 = vmatprep.subr.bf16.mxu0 0
    %365 = vmatpush1.bf16.msra.mxu0 0
    %366 = vmatprep.subr.bf16.mxu0 0
    %367 = vmatpush1.bf16.msra.mxu0 0
    %368 = vmatprep.subr.bf16.mxu0 0
    %369 = vmatpush1.bf16.msra.mxu0 0
    %370 = vmatprep.subr.bf16.mxu0 0
    %371 = vmatpush1.bf16.msra.mxu0 0
    %372 = vmatprep.subr.bf16.mxu0 0
    %373 = vmatpush1.bf16.msra.mxu0 0
    %374 = vmatprep.subr.bf16.mxu0 0
    %375 = vmatpush1.bf16.msra.mxu0 0
    %376 = vmatprep.subr.bf16.mxu0 0
    %377 = vmatpush1.bf16.msra.mxu0 0
    %378 = vmatprep.subr.bf16.mxu0 0
    %379 = vmatpush1.bf16.msra.mxu0 0
    %380 = vmatprep.subr.bf16.mxu0 0
    %381 = vmatpush1.bf16.msra.mxu0 0
    %382 = vmatprep.subr.bf16.mxu0 0
    %383 = vmatpush1.bf16.msra.mxu0 0
    %384 = vmatprep.mubr.bf16.mxu0 0
    %385 = vmatmul.mubr.bf16.gmra.mrb[0].mxu0 %v307
    %v386 = vpop.f32.mrb[0].mxu0
    %v387 = vadd.f32 %v71, %v386
    %v388 = vpop.f32.mrb[0].mxu0
    %v389 = vadd.f32 %v75, %v388
    %v390 = vpop.f32.mrb[0].mxu0
    %v391 = vadd.f32 %v71, %v390
    %v392 = vpop.f32.mrb[0].mxu0
    %v393 = vadd.f32 %v75, %v392
    %394 = vdwg.mxu0
    %395 = vmatprep.subr.bf16.mxu0 %v246
    %396 = vmatpush1.bf16.msra.mxu0 %v245
    %397 = vmatprep.subr.bf16.mxu0 %v262
    %398 = vmatpush1.bf16.msra.mxu0 %v261
    %399 = vmatprep.subr.bf16.mxu0 0
    %400 = vmatpush1.bf16.msra.mxu0 0
    %401 = vmatprep.subr.bf16.mxu0 0
    %402 = vmatpush1.bf16.msra.mxu0 0
    %403 = vmatprep.subr.bf16.mxu0 0
    %404 = vmatpush1.bf16.msra.mxu0 0
    %405 = vmatprep.subr.bf16.mxu0 0
    %406 = vmatpush1.bf16.msra.mxu0 0
    %407 = vmatprep.subr.bf16.mxu0 0
    %408 = vmatpush1.bf16.msra.mxu0 0
    %409 = vmatprep.subr.bf16.mxu0 0
    %410 = vmatpush1.bf16.msra.mxu0 0
    %411 = vmatprep.subr.bf16.mxu0 0
    %412 = vmatpush1.bf16.msra.mxu0 0
    %413 = vmatprep.subr.bf16.mxu0 0
    %414 = vmatpush1.bf16.msra.mxu0 0
    %415 = vmatprep.subr.bf16.mxu0 0
    %416 = vmatpush1.bf16.msra.mxu0 0
    %417 = vmatprep.subr.bf16.mxu0 0
    %418 = vmatpush1.bf16.msra.mxu0 0
    %419 = vmatprep.subr.bf16.mxu0 0
    %420 = vmatpush1.bf16.msra.mxu0 0
    %421 = vmatprep.subr.bf16.mxu0 0
    %422 = vmatpush1.bf16.msra.mxu0 0
    %423 = vmatprep.subr.bf16.mxu0 0
    %424 = vmatpush1.bf16.msra.mxu0 0
    %425 = vmatprep.subr.bf16.mxu0 0
    %426 = vmatpush1.bf16.msra.mxu0 0
    %427 = vmatprep.mubr.bf16.mxu0 0
    %428 = vmatmul.mubr.bf16.gmra.mrb[0].mxu0 %v307
    %v429 = vpop.f32.mrb[0].mxu0
    %v430 = vadd.f32 %v79, %v429
    %v431 = vpop.f32.mrb[0].mxu0
    %v432 = vadd.f32 %v83, %v431
    %v433 = vpop.f32.mrb[0].mxu0
    %v434 = vadd.f32 %v79, %v433
    %v435 = vpop.f32.mrb[0].mxu0
    %v436 = vadd.f32 %v83, %v435
    %437 = vdwg.mxu0
    %438 = vmatprep.subr.bf16.mxu0 %v248
    %439 = vmatpush1.bf16.msra.mxu0 %v247
    %440 = vmatprep.subr.bf16.mxu0 %v264
    %441 = vmatpush1.bf16.msra.mxu0 %v263
    %442 = vmatprep.subr.bf16.mxu0 0
    %443 = vmatpush1.bf16.msra.mxu0 0
    %444 = vmatprep.subr.bf16.mxu0 0
    %445 = vmatpush1.bf16.msra.mxu0 0
    %446 = vmatprep.subr.bf16.mxu0 0
    %447 = vmatpush1.bf16.msra.mxu0 0
    %448 = vmatprep.subr.bf16.mxu0 0
    %449 = vmatpush1.bf16.msra.mxu0 0
    %450 = vmatprep.subr.bf16.mxu0 0
    %451 = vmatpush1.bf16.msra.mxu0 0
    %452 = vmatprep.subr.bf16.mxu0 0
    %453 = vmatpush1.bf16.msra.mxu0 0
    %454 = vmatprep.subr.bf16.mxu0 0
    %455 = vmatpush1.bf16.msra.mxu0 0
    %456 = vmatprep.subr.bf16.mxu0 0
    %457 = vmatpush1.bf16.msra.mxu0 0
    %458 = vmatprep.subr.bf16.mxu0 0
    %459 = vmatpush1.bf16.msra.mxu0 0
    %460 = vmatprep.subr.bf16.mxu0 0
    %461 = vmatpush1.bf16.msra.mxu0 0
    %462 = vmatprep.subr.bf16.mxu0 0
    %463 = vmatpush1.bf16.msra.mxu0 0
    %464 = vmatprep.subr.bf16.mxu0 0
    %465 = vmatpush1.bf16.msra.mxu0 0
    %466 = vmatprep.subr.bf16.mxu0 0
    %467 = vmatpush1.bf16.msra.mxu0 0
    %468 = vmatprep.subr.bf16.mxu0 0
    %469 = vmatpush1.bf16.msra.mxu0 0
    %470 = vmatprep.mubr.bf16.mxu0 0
    %471 = vmatmul.mubr.bf16.gmra.mrb[0].mxu0 %v307
    %v472 = vpop.f32.mrb[0].mxu0
    %v473 = vadd.f32 %v87, %v472
    %v474 = vpop.f32.mrb[0].mxu0
    %v475 = vadd.f32 %v91, %v474
    %v476 = vpop.f32.mrb[0].mxu0
    %v477 = vadd.f32 %v87, %v476
    %v478 = vpop.f32.mrb[0].mxu0
    %v479 = vadd.f32 %v91, %v478
    %480 = vdwg.mxu0
    %481 = vmatprep.subr.bf16.mxu0 %v250
    %482 = vmatpush1.bf16.msra.mxu0 %v249
    %483 = vmatprep.subr.bf16.mxu0 %v266
    %484 = vmatpush1.bf16.msra.mxu0 %v265
    %485 = vmatprep.subr.bf16.mxu0 0
    %486 = vmatpush1.bf16.msra.mxu0 0
    %487 = vmatprep.subr.bf16.mxu0 0
    %488 = vmatpush1.bf16.msra.mxu0 0
    %489 = vmatprep.subr.bf16.mxu0 0
    %490 = vmatpush1.bf16.msra.mxu0 0
    %491 = vmatprep.subr.bf16.mxu0 0
    %492 = vmatpush1.bf16.msra.mxu0 0
    %493 = vmatprep.subr.bf16.mxu0 0
    %494 = vmatpush1.bf16.msra.mxu0 0
    %495 = vmatprep.subr.bf16.mxu0 0
    %496 = vmatpush1.bf16.msra.mxu0 0
    %497 = vmatprep.subr.bf16.mxu0 0
    %498 = vmatpush1.bf16.msra.mxu0 0
    %499 = vmatprep.subr.bf16.mxu0 0
    %500 = vmatpush1.bf16.msra.mxu0 0
    %501 = vmatprep.subr.bf16.mxu0 0
    %502 = vmatpush1.bf16.msra.mxu0 0
    %503 = vmatprep.subr.bf16.mxu0 0
    %504 = vmatpush1.bf16.msra.mxu0 0
    %505 = vmatprep.subr.bf16.mxu0 0
    %506 = vmatpush1.bf16.msra.mxu0 0
    %507 = vmatprep.subr.bf16.mxu0 0
    %508 = vmatpush1.bf16.msra.mxu0 0
    %509 = vmatprep.subr.bf16.mxu0 0
    %510 = vmatpush1.bf16.msra.mxu0 0
    %511 = vmatprep.subr.bf16.mxu0 0
    %512 = vmatpush1.bf16.msra.mxu0 0
    %513 = vmatprep.mubr.bf16.mxu0 0
    %514 = vmatmul.mubr.bf16.gmra.mrb[0].mxu0 %v307
    %v515 = vpop.f32.mrb[0].mxu0
    %v516 = vadd.f32 %v95, %v515
    %v517 = vpop.f32.mrb[0].mxu0
    %v518 = vadd.f32 %v99, %v517
    %v519 = vpop.f32.mrb[0].mxu0
    %v520 = vadd.f32 %v95, %v519
    %v521 = vpop.f32.mrb[0].mxu0
    %v522 = vadd.f32 %v99, %v521
    %523 = vdwg.mxu0
    %524 = vmatprep.subr.bf16.mxu0 %v252
    %525 = vmatpush1.bf16.msra.mxu0 %v251
    %526 = vmatprep.subr.bf16.mxu0 %v268
    %527 = vmatpush1.bf16.msra.mxu0 %v267
    %528 = vmatprep.subr.bf16.mxu0 0
    %529 = vmatpush1.bf16.msra.mxu0 0
    %530 = vmatprep.subr.bf16.mxu0 0
    %531 = vmatpush1.bf16.msra.mxu0 0
    %532 = vmatprep.subr.bf16.mxu0 0
    %533 = vmatpush1.bf16.msra.mxu0 0
    %534 = vmatprep.subr.bf16.mxu0 0
    %535 = vmatpush1.bf16.msra.mxu0 0
    %536 = vmatprep.subr.bf16.mxu0 0
    %537 = vmatpush1.bf16.msra.mxu0 0
    %538 = vmatprep.subr.bf16.mxu0 0
    %539 = vmatpush1.bf16.msra.mxu0 0
    %540 = vmatprep.subr.bf16.mxu0 0
    %541 = vmatpush1.bf16.msra.mxu0 0
    %542 = vmatprep.subr.bf16.mxu0 0
    %543 = vmatpush1.bf16.msra.mxu0 0
    %544 = vmatprep.subr.bf16.mxu0 0
    %545 = vmatpush1.bf16.msra.mxu0 0
    %546 = vmatprep.subr.bf16.mxu0 0
    %547 = vmatpush1.bf16.msra.mxu0 0
    %548 = vmatprep.subr.bf16.mxu0 0
    %549 = vmatpush1.bf16.msra.mxu0 0
    %550 = vmatprep.subr.bf16.mxu0 0
    %551 = vmatpush1.bf16.msra.mxu0 0
    %552 = vmatprep.subr.bf16.mxu0 0
    %553 = vmatpush1.bf16.msra.mxu0 0
    %554 = vmatprep.subr.bf16.mxu0 0
    %555 = vmatpush1.bf16.msra.mxu0 0
    %556 = vmatprep.mubr.bf16.mxu0 0
    %557 = vmatmul.mubr.bf16.gmra.mrb[0].mxu0 %v307
    %v558 = vpop.f32.mrb[0].mxu0
    %v559 = vadd.f32 %v103, %v558
    %v560 = vpop.f32.mrb[0].mxu0
    %v561 = vadd.f32 %v107, %v560
    %v562 = vpop.f32.mrb[0].mxu0
    %v563 = vadd.f32 %v103, %v562
    %v564 = vpop.f32.mrb[0].mxu0
    %v565 = vadd.f32 %v107, %v564
    %566 = vdwg.mxu0
    %567 = vmatprep.subr.bf16.mxu0 %v254
    %568 = vmatpush1.bf16.msra.mxu0 %v253
    %569 = vmatprep.subr.bf16.mxu0 %v270
    %570 = vmatpush1.bf16.msra.mxu0 %v269
    %571 = vmatprep.subr.bf16.mxu0 0
    %572 = vmatpush1.bf16.msra.mxu0 0
    %573 = vmatprep.subr.bf16.mxu0 0
    %574 = vmatpush1.bf16.msra.mxu0 0
    %575 = vmatprep.subr.bf16.mxu0 0
    %576 = vmatpush1.bf16.msra.mxu0 0
    %577 = vmatprep.subr.bf16.mxu0 0
    %578 = vmatpush1.bf16.msra.mxu0 0
    %579 = vmatprep.subr.bf16.mxu0 0
    %580 = vmatpush1.bf16.msra.mxu0 0
    %581 = vmatprep.subr.bf16.mxu0 0
    %582 = vmatpush1.bf16.msra.mxu0 0
    %583 = vmatprep.subr.bf16.mxu0 0
    %584 = vmatpush1.bf16.msra.mxu0 0
    %585 = vmatprep.subr.bf16.mxu0 0
    %586 = vmatpush1.bf16.msra.mxu0 0
    %587 = vmatprep.subr.bf16.mxu0 0
    %588 = vmatpush1.bf16.msra.mxu0 0
    %589 = vmatprep.subr.bf16.mxu0 0
    %590 = vmatpush1.bf16.msra.mxu0 0
    %591 = vmatprep.subr.bf16.mxu0 0
    %592 = vmatpush1.bf16.msra.mxu0 0
    %593 = vmatprep.subr.bf16.mxu0 0
    %594 = vmatpush1.bf16.msra.mxu0 0
    %595 = vmatprep.subr.bf16.mxu0 0
    %596 = vmatpush1.bf16.msra.mxu0 0
    %597 = vmatprep.subr.bf16.mxu0 0
    %598 = vmatpush1.bf16.msra.mxu0 0
    %599 = vmatprep.mubr.bf16.mxu0 0
    %600 = vmatmul.mubr.bf16.gmra.mrb[0].mxu0 %v307
    %v601 = vpop.f32.mrb[0].mxu0
    %v602 = vadd.f32 %v111, %v601
    %v603 = vpop.f32.mrb[0].mxu0
    %v604 = vadd.f32 %v115, %v603
    %v605 = vpop.f32.mrb[0].mxu0
    %v606 = vadd.f32 %v111, %v605
    %v607 = vpop.f32.mrb[0].mxu0
    %v608 = vadd.f32 %v115, %v607
    %609 = vdwg.mxu0
    %610 = vmatprep.subr.bf16.mxu0 %v256
    %611 = vmatpush1.bf16.msra.mxu0 %v255
    %612 = vmatprep.subr.bf16.mxu0 %v272
    %613 = vmatpush1.bf16.msra.mxu0 %v271
    %614 = vmatprep.subr.bf16.mxu0 0
    %615 = vmatpush1.bf16.msra.mxu0 0
    %616 = vmatprep.subr.bf16.mxu0 0
    %617 = vmatpush1.bf16.msra.mxu0 0
    %618 = vmatprep.subr.bf16.mxu0 0
    %619 = vmatpush1.bf16.msra.mxu0 0
    %620 = vmatprep.subr.bf16.mxu0 0
    %621 = vmatpush1.bf16.msra.mxu0 0
    %622 = vmatprep.subr.bf16.mxu0 0
    %623 = vmatpush1.bf16.msra.mxu0 0
    %624 = vmatprep.subr.bf16.mxu0 0
    %625 = vmatpush1.bf16.msra.mxu0 0
    %626 = vmatprep.subr.bf16.mxu0 0
    %627 = vmatpush1.bf16.msra.mxu0 0
    %628 = vmatprep.subr.bf16.mxu0 0
    %629 = vmatpush1.bf16.msra.mxu0 0
    %630 = vmatprep.subr.bf16.mxu0 0
    %631 = vmatpush1.bf16.msra.mxu0 0
    %632 = vmatprep.subr.bf16.mxu0 0
    %633 = vmatpush1.bf16.msra.mxu0 0
    %634 = vmatprep.subr.bf16.mxu0 0
    %635 = vmatpush1.bf16.msra.mxu0 0
    %636 = vmatprep.subr.bf16.mxu0 0
    %637 = vmatpush1.bf16.msra.mxu0 0
    %638 = vmatprep.subr.bf16.mxu0 0
    %639 = vmatpush1.bf16.msra.mxu0 0
    %640 = vmatprep.subr.bf16.mxu0 0
    %641 = vmatpush1.bf16.msra.mxu0 0
    %642 = vmatprep.mubr.bf16.mxu0 0
    %643 = vmatmul.mubr.bf16.gmra.mrb[0].mxu0 %v307
    %v644 = vpop.f32.mrb[0].mxu0
    %v645 = vadd.f32 %v119, %v644
    %v646 = vpop.f32.mrb[0].mxu0
    %v647 = vadd.f32 %v123, %v646
    %v648 = vpop.f32.mrb[0].mxu0
    %v649 = vadd.f32 %v119, %v648
    %v650 = vpop.f32.mrb[0].mxu0
    %v651 = vadd.f32 %v123, %v650
    %652 = vdwg.mxu0
    %v653 = vmax.f32 %v344, 0.0
    %v654 = vmax.f32 %v346, 0.0
    %v655 = vmax.f32 %v387, 0.0
    %v656 = vmax.f32 %v389, 0.0
    %v657 = vmax.f32 %v430, 0.0
    %v658 = vmax.f32 %v432, 0.0
    %v659 = vmax.f32 %v473, 0.0
    %v660 = vmax.f32 %v475, 0.0
    %v661 = vmax.f32 %v516, 0.0
    %v662 = vmax.f32 %v518, 0.0
    %v663 = vmax.f32 %v559, 0.0
    %v664 = vmax.f32 %v561, 0.0
    %v665 = vmax.f32 %v602, 0.0
    %v666 = vmax.f32 %v604, 0.0
    %v667 = vmax.f32 %v645, 0.0
    %v668 = vmax.f32 %v647, 0.0
    %v669 = vmax.f32 %v348, 0.0
    %v670 = vmax.f32 %v350, 0.0
    %v671 = vmax.f32 %v391, 0.0
    %v672 = vmax.f32 %v393, 0.0
    %v673 = vmax.f32 %v434, 0.0
    %v674 = vmax.f32 %v436, 0.0
    %v675 = vmax.f32 %v477, 0.0
    %v676 = vmax.f32 %v479, 0.0
    %v677 = vmax.f32 %v520, 0.0
    %v678 = vmax.f32 %v522, 0.0
    %v679 = vmax.f32 %v563, 0.0
    %v680 = vmax.f32 %v565, 0.0
    %v681 = vmax.f32 %v606, 0.0
    %v682 = vmax.f32 %v608, 0.0
    %v683 = vmax.f32 %v649, 0.0
    %v684 = vmax.f32 %v651, 0.0
    %v685 = vpack.c.bf16 %v669, %v653
    %v686 = vpack.c.bf16 %v670, %v654
    %v687 = vpack.c.bf16 %v671, %v655
    %v688 = vpack.c.bf16 %v672, %v656
    %v689 = vpack.c.bf16 %v673, %v657
    %v690 = vpack.c.bf16 %v674, %v658
    %v691 = vpack.c.bf16 %v675, %v659
    %v692 = vpack.c.bf16 %v676, %v660
    %v693 = vpack.c.bf16 %v677, %v661
    %v694 = vpack.c.bf16 %v678, %v662
    %v695 = vpack.c.bf16 %v679, %v663
    %v696 = vpack.c.bf16 %v680, %v664
    %v697 = vpack.c.bf16 %v681, %v665
    %v698 = vpack.c.bf16 %v682, %v666
    %v699 = vpack.c.bf16 %v683, %v667
    %v700 = vpack.c.bf16 %v684, %v668
    %v701 = vld [vmem:[%s3] sm:$0xf]
    %v702 = vld [vmem:[%s3 + $0x4] sm:$0xf]
    %v703 = vld [vmem:[%s3 + $0x8] sm:$0xf]
    %v704 = vld [vmem:[%s3 + $0xc] sm:$0xf]
    %v705 = vld [vmem:[%s3 + $0x10] sm:$0xf]
    %v706 = vld [vmem:[%s3 + $0x14] sm:$0xf]
    %v707 = vld [vmem:[%s3 + $0x18] sm:$0xf]
    %v708 = vld [vmem:[%s3 + $0x1c] sm:$0xf]
    %v709 = vld [vmem:[%s3 + $0x20] sm:$0xf]
    %v710 = vld [vmem:[%s3 + $0x24] sm:$0xf]
    %v711 = vld [vmem:[%s3 + $0x28] sm:$0xf]
    %v712 = vld [vmem:[%s3 + $0x2c] sm:$0xf]
    %v713 = vld [vmem:[%s3 + $0x30] sm:$0xf]
    %v714 = vld [vmem:[%s3 + $0x34] sm:$0xf]
    %v715 = vld [vmem:[%s3 + $0x38] sm:$0xf]
    %v716 = vld [vmem:[%s3 + $0x3c] sm:$0xf]
    %v717 = vld [vmem:[%s3 + $0x40] sm:$0xf]
    %v718 = vld [vmem:[%s3 + $0x44] sm:$0xf]
    %v719 = vld [vmem:[%s3 + $0x48] sm:$0xf]
    %v720 = vld [vmem:[%s3 + $0x4c] sm:$0xf]
    %v721 = vld [vmem:[%s3 + $0x50] sm:$0xf]
    %v722 = vld [vmem:[%s3 + $0x54] sm:$0xf]
    %v723 = vld [vmem:[%s3 + $0x58] sm:$0xf]
    %v724 = vld [vmem:[%s3 + $0x5c] sm:$0xf]
    %v725 = vld [vmem:[%s3 + $0x60] sm:$0xf]
    %v726 = vld [vmem:[%s3 + $0x64] sm:$0xf]
    %v727 = vld [vmem:[%s3 + $0x68] sm:$0xf]
    %v728 = vld [vmem:[%s3 + $0x6c] sm:$0xf]
    %v729 = vld [vmem:[%s3 + $0x70] sm:$0xf]
    %v730 = vld [vmem:[%s3 + $0x74] sm:$0xf]
    %v731 = vld [vmem:[%s3 + $0x78] sm:$0xf]
    %v732 = vld [vmem:[%s3 + $0x7c] sm:$0xf]
    %v733 = vld [vmem:[%s3 + $0x80] sm:$0xf]
    %v734 = vld [vmem:[%s3 + $0x84] sm:$0xf]
    %v735 = vld [vmem:[%s3 + $0x88] sm:$0xf]
    %v736 = vld [vmem:[%s3 + $0x8c] sm:$0xf]
    %v737 = vld [vmem:[%s3 + $0x90] sm:$0xf]
    %v738 = vld [vmem:[%s3 + $0x94] sm:$0xf]
    %v739 = vld [vmem:[%s3 + $0x98] sm:$0xf]
    %v740 = vld [vmem:[%s3 + $0x9c] sm:$0xf]
    %v741 = vld [vmem:[%s3 + $0xa0] sm:$0xf]
    %v742 = vld [vmem:[%s3 + $0xa4] sm:$0xf]
    %v743 = vld [vmem:[%s3 + $0xa8] sm:$0xf]
    %v744 = vld [vmem:[%s3 + $0xac] sm:$0xf]
    %v745 = vld [vmem:[%s3 + $0xb0] sm:$0xf]
    %v746 = vld [vmem:[%s3 + $0xb4] sm:$0xf]
    %v747 = vld [vmem:[%s3 + $0xb8] sm:$0xf]
    %v748 = vld [vmem:[%s3 + $0xbc] sm:$0xf]
    %v749 = vld [vmem:[%s3 + $0xc0] sm:$0xf]
    %v750 = vld [vmem:[%s3 + $0xc4] sm:$0xf]
    %v751 = vld [vmem:[%s3 + $0xc8] sm:$0xf]
    %v752 = vld [vmem:[%s3 + $0xcc] sm:$0xf]
    %v753 = vld [vmem:[%s3 + $0xd0] sm:$0xf]
    %v754 = vld [vmem:[%s3 + $0xd4] sm:$0xf]
    %v755 = vld [vmem:[%s3 + $0xd8] sm:$0xf]
    %v756 = vld [vmem:[%s3 + $0xdc] sm:$0xf]
    %v757 = vld [vmem:[%s3 + $0xe0] sm:$0xf]
    %v758 = vld [vmem:[%s3 + $0xe4] sm:$0xf]
    %v759 = vld [vmem:[%s3 + $0xe8] sm:$0xf]
    %v760 = vld [vmem:[%s3 + $0xec] sm:$0xf]
    %v761 = vld [vmem:[%s3 + $0xf0] sm:$0xf]
    %v762 = vld [vmem:[%s3 + $0xf4] sm:$0xf]
    %v763 = vld [vmem:[%s3 + $0xf8] sm:$0xf]
    %v764 = vld [vmem:[%s3 + $0xfc] sm:$0xf]
    %v765 = vld [vmem:[%s3 + $0x100] sm:$0xf]
    %v766 = vld [vmem:[%s3 + $0x104] sm:$0xf]
    %v767 = vld [vmem:[%s3 + $0x108] sm:$0xf]
    %v768 = vld [vmem:[%s3 + $0x10c] sm:$0xf]
    %v769 = vld [vmem:[%s3 + $0x110] sm:$0xf]
    %v770 = vld [vmem:[%s3 + $0x114] sm:$0xf]
    %v771 = vld [vmem:[%s3 + $0x118] sm:$0xf]
    %v772 = vld [vmem:[%s3 + $0x11c] sm:$0xf]
    %v773 = vld [vmem:[%s3 + $0x120] sm:$0xf]
    %v774 = vld [vmem:[%s3 + $0x124] sm:$0xf]
    %v775 = vld [vmem:[%s3 + $0x128] sm:$0xf]
    %v776 = vld [vmem:[%s3 + $0x12c] sm:$0xf]
    %v777 = vld [vmem:[%s3 + $0x130] sm:$0xf]
    %v778 = vld [vmem:[%s3 + $0x134] sm:$0xf]
    %v779 = vld [vmem:[%s3 + $0x138] sm:$0xf]
    %v780 = vld [vmem:[%s3 + $0x13c] sm:$0xf]
    %v781 = vld [vmem:[%s3 + $0x140] sm:$0xf]
    %v782 = vld [vmem:[%s3 + $0x144] sm:$0xf]
    %v783 = vld [vmem:[%s3 + $0x148] sm:$0xf]
    %v784 = vld [vmem:[%s3 + $0x14c] sm:$0xf]
    %v785 = vld [vmem:[%s3 + $0x150] sm:$0xf]
    %v786 = vld [vmem:[%s3 + $0x154] sm:$0xf]
    %v787 = vld [vmem:[%s3 + $0x158] sm:$0xf]
    %v788 = vld [vmem:[%s3 + $0x15c] sm:$0xf]
    %v789 = vld [vmem:[%s3 + $0x160] sm:$0xf]
    %v790 = vld [vmem:[%s3 + $0x164] sm:$0xf]
    %v791 = vld [vmem:[%s3 + $0x168] sm:$0xf]
    %v792 = vld [vmem:[%s3 + $0x16c] sm:$0xf]
    %v793 = vld [vmem:[%s3 + $0x170] sm:$0xf]
    %v794 = vld [vmem:[%s3 + $0x174] sm:$0xf]
    %v795 = vld [vmem:[%s3 + $0x178] sm:$0xf]
    %v796 = vld [vmem:[%s3 + $0x17c] sm:$0xf]
    %v797 = vld [vmem:[%s3 + $0x180] sm:$0xf]
    %v798 = vld [vmem:[%s3 + $0x184] sm:$0xf]
    %v799 = vld [vmem:[%s3 + $0x188] sm:$0xf]
    %v800 = vld [vmem:[%s3 + $0x18c] sm:$0xf]
    %v801 = vld [vmem:[%s3 + $0x190] sm:$0xf]
    %v802 = vld [vmem:[%s3 + $0x194] sm:$0xf]
    %v803 = vld [vmem:[%s3 + $0x198] sm:$0xf]
    %v804 = vld [vmem:[%s3 + $0x19c] sm:$0xf]
    %v805 = vld [vmem:[%s3 + $0x1a0] sm:$0xf]
    %v806 = vld [vmem:[%s3 + $0x1a4] sm:$0xf]
    %v807 = vld [vmem:[%s3 + $0x1a8] sm:$0xf]
    %v808 = vld [vmem:[%s3 + $0x1ac] sm:$0xf]
    %v809 = vld [vmem:[%s3 + $0x1b0] sm:$0xf]
    %v810 = vld [vmem:[%s3 + $0x1b4] sm:$0xf]
    %v811 = vld [vmem:[%s3 + $0x1b8] sm:$0xf]
    %v812 = vld [vmem:[%s3 + $0x1bc] sm:$0xf]
    %v813 = vld [vmem:[%s3 + $0x1c0] sm:$0xf]
    %v814 = vld [vmem:[%s3 + $0x1c4] sm:$0xf]
    %v815 = vld [vmem:[%s3 + $0x1c8] sm:$0xf]
    %v816 = vld [vmem:[%s3 + $0x1cc] sm:$0xf]
    %v817 = vld [vmem:[%s3 + $0x1d0] sm:$0xf]
    %v818 = vld [vmem:[%s3 + $0x1d4] sm:$0xf]
    %v819 = vld [vmem:[%s3 + $0x1d8] sm:$0xf]
    %v820 = vld [vmem:[%s3 + $0x1dc] sm:$0xf]
    %v821 = vld [vmem:[%s3 + $0x1e0] sm:$0xf]
    %v822 = vld [vmem:[%s3 + $0x1e4] sm:$0xf]
    %v823 = vld [vmem:[%s3 + $0x1e8] sm:$0xf]
    %v824 = vld [vmem:[%s3 + $0x1ec] sm:$0xf]
    %v825 = vld [vmem:[%s3 + $0x1f0] sm:$0xf]
    %v826 = vld [vmem:[%s3 + $0x1f4] sm:$0xf]
    %v827 = vld [vmem:[%s3 + $0x1f8] sm:$0xf]
    %v828 = vld [vmem:[%s3 + $0x1fc] sm:$0xf]
    %v829 = vld [vmem:[%s3 + $0x200] sm:$0xf]
    %v830 = vld [vmem:[%s3 + $0x204] sm:$0xf]
    %v831 = vld [vmem:[%s3 + $0x208] sm:$0xf]
    %v832 = vld [vmem:[%s3 + $0x20c] sm:$0xf]
    %v833 = vld [vmem:[%s3 + $0x210] sm:$0xf]
    %v834 = vld [vmem:[%s3 + $0x214] sm:$0xf]
    %v835 = vld [vmem:[%s3 + $0x218] sm:$0xf]
    %v836 = vld [vmem:[%s3 + $0x21c] sm:$0xf]
    %v837 = vld [vmem:[%s3 + $0x220] sm:$0xf]
    %v838 = vld [vmem:[%s3 + $0x224] sm:$0xf]
    %v839 = vld [vmem:[%s3 + $0x228] sm:$0xf]
    %v840 = vld [vmem:[%s3 + $0x22c] sm:$0xf]
    %v841 = vld [vmem:[%s3 + $0x230] sm:$0xf]
    %v842 = vld [vmem:[%s3 + $0x234] sm:$0xf]
    %v843 = vld [vmem:[%s3 + $0x238] sm:$0xf]
    %v844 = vld [vmem:[%s3 + $0x23c] sm:$0xf]
    %v845 = vld [vmem:[%s3 + $0x240] sm:$0xf]
    %v846 = vld [vmem:[%s3 + $0x244] sm:$0xf]
    %v847 = vld [vmem:[%s3 + $0x248] sm:$0xf]
    %v848 = vld [vmem:[%s3 + $0x24c] sm:$0xf]
    %v849 = vld [vmem:[%s3 + $0x250] sm:$0xf]
    %v850 = vld [vmem:[%s3 + $0x254] sm:$0xf]
    %v851 = vld [vmem:[%s3 + $0x258] sm:$0xf]
    %v852 = vld [vmem:[%s3 + $0x25c] sm:$0xf]
    %v853 = vld [vmem:[%s3 + $0x260] sm:$0xf]
    %v854 = vld [vmem:[%s3 + $0x264] sm:$0xf]
    %v855 = vld [vmem:[%s3 + $0x268] sm:$0xf]
    %v856 = vld [vmem:[%s3 + $0x26c] sm:$0xf]
    %v857 = vld [vmem:[%s3 + $0x270] sm:$0xf]
    %v858 = vld [vmem:[%s3 + $0x274] sm:$0xf]
    %v859 = vld [vmem:[%s3 + $0x278] sm:$0xf]
    %v860 = vld [vmem:[%s3 + $0x27c] sm:$0xf]
    %v861 = vld [vmem:[%s3 + $0x280] sm:$0xf]
    %v862 = vld [vmem:[%s3 + $0x284] sm:$0xf]
    %v863 = vld [vmem:[%s3 + $0x288] sm:$0xf]
    %v864 = vld [vmem:[%s3 + $0x28c] sm:$0xf]
    %v865 = vld [vmem:[%s3 + $0x290] sm:$0xf]
    %v866 = vld [vmem:[%s3 + $0x294] sm:$0xf]
    %v867 = vld [vmem:[%s3 + $0x298] sm:$0xf]
    %v868 = vld [vmem:[%s3 + $0x29c] sm:$0xf]
    %v869 = vld [vmem:[%s3 + $0x2a0] sm:$0xf]
    %v870 = vld [vmem:[%s3 + $0x2a4] sm:$0xf]
    %v871 = vld [vmem:[%s3 + $0x2a8] sm:$0xf]
    %v872 = vld [vmem:[%s3 + $0x2ac] sm:$0xf]
    %v873 = vld [vmem:[%s3 + $0x2b0] sm:$0xf]
    %v874 = vld [vmem:[%s3 + $0x2b4] sm:$0xf]
    %v875 = vld [vmem:[%s3 + $0x2b8] sm:$0xf]
    %v876 = vld [vmem:[%s3 + $0x2bc] sm:$0xf]
    %v877 = vld [vmem:[%s3 + $0x2c0] sm:$0xf]
    %v878 = vld [vmem:[%s3 + $0x2c4] sm:$0xf]
    %v879 = vld [vmem:[%s3 + $0x2c8] sm:$0xf]
    %v880 = vld [vmem:[%s3 + $0x2cc] sm:$0xf]
    %v881 = vld [vmem:[%s3 + $0x2d0] sm:$0xf]
    %v882 = vld [vmem:[%s3 + $0x2d4] sm:$0xf]
    %v883 = vld [vmem:[%s3 + $0x2d8] sm:$0xf]
    %v884 = vld [vmem:[%s3 + $0x2dc] sm:$0xf]
    %v885 = vld [vmem:[%s3 + $0x2e0] sm:$0xf]
    %v886 = vld [vmem:[%s3 + $0x2e4] sm:$0xf]
    %v887 = vld [vmem:[%s3 + $0x2e8] sm:$0xf]
    %v888 = vld [vmem:[%s3 + $0x2ec] sm:$0xf]
    %v889 = vld [vmem:[%s3 + $0x2f0] sm:$0xf]
    %v890 = vld [vmem:[%s3 + $0x2f4] sm:$0xf]
    %v891 = vld [vmem:[%s3 + $0x2f8] sm:$0xf]
    %v892 = vld [vmem:[%s3 + $0x2fc] sm:$0xf]
    %v893 = vld [vmem:[%s3 + $0x300] sm:$0xf]
    %v894 = vld [vmem:[%s3 + $0x304] sm:$0xf]
    %v895 = vld [vmem:[%s3 + $0x308] sm:$0xf]
    %v896 = vld [vmem:[%s3 + $0x30c] sm:$0xf]
    %v897 = vld [vmem:[%s3 + $0x310] sm:$0xf]
    %v898 = vld [vmem:[%s3 + $0x314] sm:$0xf]
    %v899 = vld [vmem:[%s3 + $0x318] sm:$0xf]
    %v900 = vld [vmem:[%s3 + $0x31c] sm:$0xf]
    %v901 = vld [vmem:[%s3 + $0x320] sm:$0xf]
    %v902 = vld [vmem:[%s3 + $0x324] sm:$0xf]
    %v903 = vld [vmem:[%s3 + $0x328] sm:$0xf]
    %v904 = vld [vmem:[%s3 + $0x32c] sm:$0xf]
    %v905 = vld [vmem:[%s3 + $0x330] sm:$0xf]
    %v906 = vld [vmem:[%s3 + $0x334] sm:$0xf]
    %v907 = vld [vmem:[%s3 + $0x338] sm:$0xf]
    %v908 = vld [vmem:[%s3 + $0x33c] sm:$0xf]
    %v909 = vld [vmem:[%s3 + $0x340] sm:$0xf]
    %v910 = vld [vmem:[%s3 + $0x344] sm:$0xf]
    %v911 = vld [vmem:[%s3 + $0x348] sm:$0xf]
    %v912 = vld [vmem:[%s3 + $0x34c] sm:$0xf]
    %v913 = vld [vmem:[%s3 + $0x350] sm:$0xf]
    %v914 = vld [vmem:[%s3 + $0x354] sm:$0xf]
    %v915 = vld [vmem:[%s3 + $0x358] sm:$0xf]
    %v916 = vld [vmem:[%s3 + $0x35c] sm:$0xf]
    %v917 = vld [vmem:[%s3 + $0x360] sm:$0xf]
    %v918 = vld [vmem:[%s3 + $0x364] sm:$0xf]
    %v919 = vld [vmem:[%s3 + $0x368] sm:$0xf]
    %v920 = vld [vmem:[%s3 + $0x36c] sm:$0xf]
    %v921 = vld [vmem:[%s3 + $0x370] sm:$0xf]
    %v922 = vld [vmem:[%s3 + $0x374] sm:$0xf]
    %v923 = vld [vmem:[%s3 + $0x378] sm:$0xf]
    %v924 = vld [vmem:[%s3 + $0x37c] sm:$0xf]
    %v925 = vld [vmem:[%s3 + $0x380] sm:$0xf]
    %v926 = vld [vmem:[%s3 + $0x384] sm:$0xf]
    %v927 = vld [vmem:[%s3 + $0x388] sm:$0xf]
    %v928 = vld [vmem:[%s3 + $0x38c] sm:$0xf]
    %v929 = vld [vmem:[%s3 + $0x390] sm:$0xf]
    %v930 = vld [vmem:[%s3 + $0x394] sm:$0xf]
    %v931 = vld [vmem:[%s3 + $0x398] sm:$0xf]
    %v932 = vld [vmem:[%s3 + $0x39c] sm:$0xf]
    %v933 = vld [vmem:[%s3 + $0x3a0] sm:$0xf]
    %v934 = vld [vmem:[%s3 + $0x3a4] sm:$0xf]
    %v935 = vld [vmem:[%s3 + $0x3a8] sm:$0xf]
    %v936 = vld [vmem:[%s3 + $0x3ac] sm:$0xf]
    %v937 = vld [vmem:[%s3 + $0x3b0] sm:$0xf]
    %v938 = vld [vmem:[%s3 + $0x3b4] sm:$0xf]
    %v939 = vld [vmem:[%s3 + $0x3b8] sm:$0xf]
    %v940 = vld [vmem:[%s3 + $0x3bc] sm:$0xf]
    %v941 = vld [vmem:[%s3 + $0x3c0] sm:$0xf]
    %v942 = vld [vmem:[%s3 + $0x3c4] sm:$0xf]
    %v943 = vld [vmem:[%s3 + $0x3c8] sm:$0xf]
    %v944 = vld [vmem:[%s3 + $0x3cc] sm:$0xf]
    %v945 = vld [vmem:[%s3 + $0x3d0] sm:$0xf]
    %v946 = vld [vmem:[%s3 + $0x3d4] sm:$0xf]
    %v947 = vld [vmem:[%s3 + $0x3d8] sm:$0xf]
    %v948 = vld [vmem:[%s3 + $0x3dc] sm:$0xf]
    %v949 = vld [vmem:[%s3 + $0x3e0] sm:$0xf]
    %v950 = vld [vmem:[%s3 + $0x3e4] sm:$0xf]
    %v951 = vld [vmem:[%s3 + $0x3e8] sm:$0xf]
    %v952 = vld [vmem:[%s3 + $0x3ec] sm:$0xf]
    %v953 = vld [vmem:[%s3 + $0x3f0] sm:$0xf]
    %v954 = vld [vmem:[%s3 + $0x3f4] sm:$0xf]
    %v955 = vld [vmem:[%s3 + $0x3f8] sm:$0xf]
    %v956 = vld [vmem:[%s3 + $0x3fc] sm:$0xf]
    %v957 = vld [vmem:[%s4] sm:$0x1]
    %v959 = vlaneseq
    %v960 = vshrl.u32 %v959, 7
    %v961 = vsub.s32 0, %v960
    %v962 = vrot.slane %v957, %v961
    %v1220 = vunpack.c.l.b16 %v701
    %v1221 = vunpack.c.l.b16 %v702
    %v1222 = vunpack.c.l.b16 %v703
    %v1223 = vunpack.c.l.b16 %v704
    %v1224 = vunpack.c.l.b16 %v705
    %v1225 = vunpack.c.l.b16 %v706
    %v1226 = vunpack.c.l.b16 %v707
    %v1227 = vunpack.c.l.b16 %v708
    %v1228 = vunpack.c.l.b16 %v709
    %v1229 = vunpack.c.l.b16 %v710
    %v1230 = vunpack.c.l.b16 %v711
    %v1231 = vunpack.c.l.b16 %v712
    %v1232 = vunpack.c.l.b16 %v713
    %v1233 = vunpack.c.l.b16 %v714
    %v1234 = vunpack.c.l.b16 %v715
    %v1235 = vunpack.c.l.b16 %v716
    %v1236 = vunpack.c.l.b16 %v717
    %v1237 = vunpack.c.l.b16 %v718
    %v1238 = vunpack.c.l.b16 %v719
    %v1239 = vunpack.c.l.b16 %v720
    %v1240 = vunpack.c.l.b16 %v721
    %v1241 = vunpack.c.l.b16 %v722
    %v1242 = vunpack.c.l.b16 %v723
    %v1243 = vunpack.c.l.b16 %v724
    %v1244 = vunpack.c.l.b16 %v725
    %v1245 = vunpack.c.l.b16 %v726
    %v1246 = vunpack.c.l.b16 %v727
    %v1247 = vunpack.c.l.b16 %v728
    %v1248 = vunpack.c.l.b16 %v729
    %v1249 = vunpack.c.l.b16 %v730
    %v1250 = vunpack.c.l.b16 %v731
    %v1251 = vunpack.c.l.b16 %v732
    %v1252 = vunpack.c.l.b16 %v733
    %v1253 = vunpack.c.l.b16 %v734
    %v1254 = vunpack.c.l.b16 %v735
    %v1255 = vunpack.c.l.b16 %v736
    %v1256 = vunpack.c.l.b16 %v737
    %v1257 = vunpack.c.l.b16 %v738
    %v1258 = vunpack.c.l.b16 %v739
    %v1259 = vunpack.c.l.b16 %v740
    %v1260 = vunpack.c.l.b16 %v741
    %v1261 = vunpack.c.l.b16 %v742
    %v1262 = vunpack.c.l.b16 %v743
    %v1263 = vunpack.c.l.b16 %v744
    %v1264 = vunpack.c.l.b16 %v745
    %v1265 = vunpack.c.l.b16 %v746
    %v1266 = vunpack.c.l.b16 %v747
    %v1267 = vunpack.c.l.b16 %v748
    %v1268 = vunpack.c.l.b16 %v749
    %v1269 = vunpack.c.l.b16 %v750
    %v1270 = vunpack.c.l.b16 %v751
    %v1271 = vunpack.c.l.b16 %v752
    %v1272 = vunpack.c.l.b16 %v753
    %v1273 = vunpack.c.l.b16 %v754
    %v1274 = vunpack.c.l.b16 %v755
    %v1275 = vunpack.c.l.b16 %v756
    %v1276 = vunpack.c.l.b16 %v757
    %v1277 = vunpack.c.l.b16 %v758
    %v1278 = vunpack.c.l.b16 %v759
    %v1279 = vunpack.c.l.b16 %v760
    %v1280 = vunpack.c.l.b16 %v761
    %v1281 = vunpack.c.l.b16 %v762
    %v1282 = vunpack.c.l.b16 %v763
    %v1283 = vunpack.c.l.b16 %v764
    %v1284 = vunpack.c.l.b16 %v765
    %v1285 = vunpack.c.l.b16 %v766
    %v1286 = vunpack.c.l.b16 %v767
    %v1287 = vunpack.c.l.b16 %v768
    %v1288 = vunpack.c.l.b16 %v769
    %v1289 = vunpack.c.l.b16 %v770
    %v1290 = vunpack.c.l.b16 %v771
    %v1291 = vunpack.c.l.b16 %v772
    %v1292 = vunpack.c.l.b16 %v773
    %v1293 = vunpack.c.l.b16 %v774
    %v1294 = vunpack.c.l.b16 %v775
    %v1295 = vunpack.c.l.b16 %v776
    %v1296 = vunpack.c.l.b16 %v777
    %v1297 = vunpack.c.l.b16 %v778
    %v1298 = vunpack.c.l.b16 %v779
    %v1299 = vunpack.c.l.b16 %v780
    %v1300 = vunpack.c.l.b16 %v781
    %v1301 = vunpack.c.l.b16 %v782
    %v1302 = vunpack.c.l.b16 %v783
    %v1303 = vunpack.c.l.b16 %v784
    %v1304 = vunpack.c.l.b16 %v785
    %v1305 = vunpack.c.l.b16 %v786
    %v1306 = vunpack.c.l.b16 %v787
    %v1307 = vunpack.c.l.b16 %v788
    %v1308 = vunpack.c.l.b16 %v789
    %v1309 = vunpack.c.l.b16 %v790
    %v1310 = vunpack.c.l.b16 %v791
    %v1311 = vunpack.c.l.b16 %v792
    %v1312 = vunpack.c.l.b16 %v793
    %v1313 = vunpack.c.l.b16 %v794
    %v1314 = vunpack.c.l.b16 %v795
    %v1315 = vunpack.c.l.b16 %v796
    %v1316 = vunpack.c.l.b16 %v797
    %v1317 = vunpack.c.l.b16 %v798
    %v1318 = vunpack.c.l.b16 %v799
    %v1319 = vunpack.c.l.b16 %v800
    %v1320 = vunpack.c.l.b16 %v801
    %v1321 = vunpack.c.l.b16 %v802
    %v1322 = vunpack.c.l.b16 %v803
    %v1323 = vunpack.c.l.b16 %v804
    %v1324 = vunpack.c.l.b16 %v805
    %v1325 = vunpack.c.l.b16 %v806
    %v1326 = vunpack.c.l.b16 %v807
    %v1327 = vunpack.c.l.b16 %v808
    %v1328 = vunpack.c.l.b16 %v809
    %v1329 = vunpack.c.l.b16 %v810
    %v1330 = vunpack.c.l.b16 %v811
    %v1331 = vunpack.c.l.b16 %v812
    %v1332 = vunpack.c.l.b16 %v813
    %v1333 = vunpack.c.l.b16 %v814
    %v1334 = vunpack.c.l.b16 %v815
    %v1335 = vunpack.c.l.b16 %v816
    %v1336 = vunpack.c.l.b16 %v817
    %v1337 = vunpack.c.l.b16 %v818
    %v1338 = vunpack.c.l.b16 %v819
    %v1339 = vunpack.c.l.b16 %v820
    %v1340 = vunpack.c.l.b16 %v821
    %v1341 = vunpack.c.l.b16 %v822
    %v1342 = vunpack.c.l.b16 %v823
    %v1343 = vunpack.c.l.b16 %v824
    %v1344 = vunpack.c.l.b16 %v825
    %v1345 = vunpack.c.l.b16 %v826
    %v1346 = vunpack.c.l.b16 %v827
    %v1347 = vunpack.c.l.b16 %v828
    %v1348 = vunpack.c.l.b16 %v829
    %v1349 = vunpack.c.l.b16 %v830
    %v1350 = vunpack.c.l.b16 %v831
    %v1351 = vunpack.c.l.b16 %v832
    %v1352 = vunpack.c.l.b16 %v833
    %v1353 = vunpack.c.l.b16 %v834
    %v1354 = vunpack.c.l.b16 %v835
    %v1355 = vunpack.c.l.b16 %v836
    %v1356 = vunpack.c.l.b16 %v837
    %v1357 = vunpack.c.l.b16 %v838
    %v1358 = vunpack.c.l.b16 %v839
    %v1359 = vunpack.c.l.b16 %v840
    %v1360 = vunpack.c.l.b16 %v841
    %v1361 = vunpack.c.l.b16 %v842
    %v1362 = vunpack.c.l.b16 %v843
    %v1363 = vunpack.c.l.b16 %v844
    %v1364 = vunpack.c.l.b16 %v845
    %v1365 = vunpack.c.l.b16 %v846
    %v1366 = vunpack.c.l.b16 %v847
    %v1367 = vunpack.c.l.b16 %v848
    %v1368 = vunpack.c.l.b16 %v849
    %v1369 = vunpack.c.l.b16 %v850
    %v1370 = vunpack.c.l.b16 %v851
    %v1371 = vunpack.c.l.b16 %v852
    %v1372 = vunpack.c.l.b16 %v853
    %v1373 = vunpack.c.l.b16 %v854
    %v1374 = vunpack.c.l.b16 %v855
    %v1375 = vunpack.c.l.b16 %v856
    %v1376 = vunpack.c.l.b16 %v857
    %v1377 = vunpack.c.l.b16 %v858
    %v1378 = vunpack.c.l.b16 %v859
    %v1379 = vunpack.c.l.b16 %v860
    %v1380 = vunpack.c.l.b16 %v861
    %v1381 = vunpack.c.l.b16 %v862
    %v1382 = vunpack.c.l.b16 %v863
    %v1383 = vunpack.c.l.b16 %v864
    %v1384 = vunpack.c.l.b16 %v865
    %v1385 = vunpack.c.l.b16 %v866
    %v1386 = vunpack.c.l.b16 %v867
    %v1387 = vunpack.c.l.b16 %v868
    %v1388 = vunpack.c.l.b16 %v869
    %v1389 = vunpack.c.l.b16 %v870
    %v1390 = vunpack.c.l.b16 %v871
    %v1391 = vunpack.c.l.b16 %v872
    %v1392 = vunpack.c.l.b16 %v873
    %v1393 = vunpack.c.l.b16 %v874
    %v1394 = vunpack.c.l.b16 %v875
    %v1395 = vunpack.c.l.b16 %v876
    %v1396 = vunpack.c.l.b16 %v877
    %v1397 = vunpack.c.l.b16 %v878
    %v1398 = vunpack.c.l.b16 %v879
    %v1399 = vunpack.c.l.b16 %v880
    %v1400 = vunpack.c.l.b16 %v881
    %v1401 = vunpack.c.l.b16 %v882
    %v1402 = vunpack.c.l.b16 %v883
    %v1403 = vunpack.c.l.b16 %v884
    %v1404 = vunpack.c.l.b16 %v885
    %v1405 = vunpack.c.l.b16 %v886
    %v1406 = vunpack.c.l.b16 %v887
    %v1407 = vunpack.c.l.b16 %v888
    %v1408 = vunpack.c.l.b16 %v889
    %v1409 = vunpack.c.l.b16 %v890
    %v1410 = vunpack.c.l.b16 %v891
    %v1411 = vunpack.c.l.b16 %v892
    %v1412 = vunpack.c.l.b16 %v893
    %v1413 = vunpack.c.l.b16 %v894
    %v1414 = vunpack.c.l.b16 %v895
    %v1415 = vunpack.c.l.b16 %v896
    %v1416 = vunpack.c.l.b16 %v897
    %v1417 = vunpack.c.l.b16 %v898
    %v1418 = vunpack.c.l.b16 %v899
    %v1419 = vunpack.c.l.b16 %v900
    %v1420 = vunpack.c.l.b16 %v901
    %v1421 = vunpack.c.l.b16 %v902
    %v1422 = vunpack.c.l.b16 %v903
    %v1423 = vunpack.c.l.b16 %v904
    %v1424 = vunpack.c.l.b16 %v905
    %v1425 = vunpack.c.l.b16 %v906
    %v1426 = vunpack.c.l.b16 %v907
    %v1427 = vunpack.c.l.b16 %v908
    %v1428 = vunpack.c.l.b16 %v909
    %v1429 = vunpack.c.l.b16 %v910
    %v1430 = vunpack.c.l.b16 %v911
    %v1431 = vunpack.c.l.b16 %v912
    %v1432 = vunpack.c.l.b16 %v913
    %v1433 = vunpack.c.l.b16 %v914
    %v1434 = vunpack.c.l.b16 %v915
    %v1435 = vunpack.c.l.b16 %v916
    %v1436 = vunpack.c.l.b16 %v917
    %v1437 = vunpack.c.l.b16 %v918
    %v1438 = vunpack.c.l.b16 %v919
    %v1439 = vunpack.c.l.b16 %v920
    %v1440 = vunpack.c.l.b16 %v921
    %v1441 = vunpack.c.l.b16 %v922
    %v1442 = vunpack.c.l.b16 %v923
    %v1443 = vunpack.c.l.b16 %v924
    %v1444 = vunpack.c.l.b16 %v925
    %v1445 = vunpack.c.l.b16 %v926
    %v1446 = vunpack.c.l.b16 %v927
    %v1447 = vunpack.c.l.b16 %v928
    %v1448 = vunpack.c.l.b16 %v929
    %v1449 = vunpack.c.l.b16 %v930
    %v1450 = vunpack.c.l.b16 %v931
    %v1451 = vunpack.c.l.b16 %v932
    %v1452 = vunpack.c.l.b16 %v933
    %v1453 = vunpack.c.l.b16 %v934
    %v1454 = vunpack.c.l.b16 %v935
    %v1455 = vunpack.c.l.b16 %v936
    %v1456 = vunpack.c.l.b16 %v937
    %v1457 = vunpack.c.l.b16 %v938
    %v1458 = vunpack.c.l.b16 %v939
    %v1459 = vunpack.c.l.b16 %v940
    %v1460 = vunpack.c.l.b16 %v941
    %v1461 = vunpack.c.l.b16 %v942
    %v1462 = vunpack.c.l.b16 %v943
    %v1463 = vunpack.c.l.b16 %v944
    %v1464 = vunpack.c.l.b16 %v945
    %v1465 = vunpack.c.l.b16 %v946
    %v1466 = vunpack.c.l.b16 %v947
    %v1467 = vunpack.c.l.b16 %v948
    %v1468 = vunpack.c.l.b16 %v949
    %v1469 = vunpack.c.l.b16 %v950
    %v1470 = vunpack.c.l.b16 %v951
    %v1471 = vunpack.c.l.b16 %v952
    %v1472 = vunpack.c.l.b16 %v953
    %v1473 = vunpack.c.l.b16 %v954
    %v1474 = vunpack.c.l.b16 %v955
    %v1475 = vunpack.c.l.b16 %v956
    %v1476 = vpack.c.b16 %v1221, %v1220
    %v1477 = vpack.c.b16 %v1223, %v1222
    %v1478 = vpack.c.b16 %v1225, %v1224
    %v1479 = vpack.c.b16 %v1227, %v1226
    %v1480 = vpack.c.b16 %v1229, %v1228
    %v1481 = vpack.c.b16 %v1231, %v1230
    %v1482 = vpack.c.b16 %v1233, %v1232
    %v1483 = vpack.c.b16 %v1235, %v1234
    %v1484 = vpack.c.b16 %v1237, %v1236
    %v1485 = vpack.c.b16 %v1239, %v1238
    %v1486 = vpack.c.b16 %v1241, %v1240
    %v1487 = vpack.c.b16 %v1243, %v1242
    %v1488 = vpack.c.b16 %v1245, %v1244
    %v1489 = vpack.c.b16 %v1247, %v1246
    %v1490 = vpack.c.b16 %v1249, %v1248
    %v1491 = vpack.c.b16 %v1251, %v1250
    %v1492 = vpack.c.b16 %v1253, %v1252
    %v1493 = vpack.c.b16 %v1255, %v1254
    %v1494 = vpack.c.b16 %v1257, %v1256
    %v1495 = vpack.c.b16 %v1259, %v1258
    %v1496 = vpack.c.b16 %v1261, %v1260
    %v1497 = vpack.c.b16 %v1263, %v1262
    %v1498 = vpack.c.b16 %v1265, %v1264
    %v1499 = vpack.c.b16 %v1267, %v1266
    %v1500 = vpack.c.b16 %v1269, %v1268
    %v1501 = vpack.c.b16 %v1271, %v1270
    %v1502 = vpack.c.b16 %v1273, %v1272
    %v1503 = vpack.c.b16 %v1275, %v1274
    %v1504 = vpack.c.b16 %v1277, %v1276
    %v1505 = vpack.c.b16 %v1279, %v1278
    %v1506 = vpack.c.b16 %v1281, %v1280
    %v1507 = vpack.c.b16 %v1283, %v1282
    %v1508 = vpack.c.b16 %v1285, %v1284
    %v1509 = vpack.c.b16 %v1287, %v1286
    %v1510 = vpack.c.b16 %v1289, %v1288
    %v1511 = vpack.c.b16 %v1291, %v1290
    %v1512 = vpack.c.b16 %v1293, %v1292
    %v1513 = vpack.c.b16 %v1295, %v1294
    %v1514 = vpack.c.b16 %v1297, %v1296
    %v1515 = vpack.c.b16 %v1299, %v1298
    %v1516 = vpack.c.b16 %v1301, %v1300
    %v1517 = vpack.c.b16 %v1303, %v1302
    %v1518 = vpack.c.b16 %v1305, %v1304
    %v1519 = vpack.c.b16 %v1307, %v1306
    %v1520 = vpack.c.b16 %v1309, %v1308
    %v1521 = vpack.c.b16 %v1311, %v1310
    %v1522 = vpack.c.b16 %v1313, %v1312
    %v1523 = vpack.c.b16 %v1315, %v1314
    %v1524 = vpack.c.b16 %v1317, %v1316
    %v1525 = vpack.c.b16 %v1319, %v1318
    %v1526 = vpack.c.b16 %v1321, %v1320
    %v1527 = vpack.c.b16 %v1323, %v1322
    %v1528 = vpack.c.b16 %v1325, %v1324
    %v1529 = vpack.c.b16 %v1327, %v1326
    %v1530 = vpack.c.b16 %v1329, %v1328
    %v1531 = vpack.c.b16 %v1331, %v1330
    %v1532 = vpack.c.b16 %v1333, %v1332
    %v1533 = vpack.c.b16 %v1335, %v1334
    %v1534 = vpack.c.b16 %v1337, %v1336
    %v1535 = vpack.c.b16 %v1339, %v1338
    %v1536 = vpack.c.b16 %v1341, %v1340
    %v1537 = vpack.c.b16 %v1343, %v1342
    %v1538 = vpack.c.b16 %v1345, %v1344
    %v1539 = vpack.c.b16 %v1347, %v1346
    %v1540 = vpack.c.b16 %v1349, %v1348
    %v1541 = vpack.c.b16 %v1351, %v1350
    %v1542 = vpack.c.b16 %v1353, %v1352
    %v1543 = vpack.c.b16 %v1355, %v1354
    %v1544 = vpack.c.b16 %v1357, %v1356
    %v1545 = vpack.c.b16 %v1359, %v1358
    %v1546 = vpack.c.b16 %v1361, %v1360
    %v1547 = vpack.c.b16 %v1363, %v1362
    %v1548 = vpack.c.b16 %v1365, %v1364
    %v1549 = vpack.c.b16 %v1367, %v1366
    %v1550 = vpack.c.b16 %v1369, %v1368
    %v1551 = vpack.c.b16 %v1371, %v1370
    %v1552 = vpack.c.b16 %v1373, %v1372
    %v1553 = vpack.c.b16 %v1375, %v1374
    %v1554 = vpack.c.b16 %v1377, %v1376
    %v1555 = vpack.c.b16 %v1379, %v1378
    %v1556 = vpack.c.b16 %v1381, %v1380
    %v1557 = vpack.c.b16 %v1383, %v1382
    %v1558 = vpack.c.b16 %v1385, %v1384
    %v1559 = vpack.c.b16 %v1387, %v1386
    %v1560 = vpack.c.b16 %v1389, %v1388
    %v1561 = vpack.c.b16 %v1391, %v1390
    %v1562 = vpack.c.b16 %v1393, %v1392
    %v1563 = vpack.c.b16 %v1395, %v1394
    %v1564 = vpack.c.b16 %v1397, %v1396
    %v1565 = vpack.c.b16 %v1399, %v1398
    %v1566 = vpack.c.b16 %v1401, %v1400
    %v1567 = vpack.c.b16 %v1403, %v1402
    %v1568 = vpack.c.b16 %v1405, %v1404
    %v1569 = vpack.c.b16 %v1407, %v1406
    %v1570 = vpack.c.b16 %v1409, %v1408
    %v1571 = vpack.c.b16 %v1411, %v1410
    %v1572 = vpack.c.b16 %v1413, %v1412
    %v1573 = vpack.c.b16 %v1415, %v1414
    %v1574 = vpack.c.b16 %v1417, %v1416
    %v1575 = vpack.c.b16 %v1419, %v1418
    %v1576 = vpack.c.b16 %v1421, %v1420
    %v1577 = vpack.c.b16 %v1423, %v1422
    %v1578 = vpack.c.b16 %v1425, %v1424
    %v1579 = vpack.c.b16 %v1427, %v1426
    %v1580 = vpack.c.b16 %v1429, %v1428
    %v1581 = vpack.c.b16 %v1431, %v1430
    %v1582 = vpack.c.b16 %v1433, %v1432
    %v1583 = vpack.c.b16 %v1435, %v1434
    %v1584 = vpack.c.b16 %v1437, %v1436
    %v1585 = vpack.c.b16 %v1439, %v1438
    %v1586 = vpack.c.b16 %v1441, %v1440
    %v1587 = vpack.c.b16 %v1443, %v1442
    %v1588 = vpack.c.b16 %v1445, %v1444
    %v1589 = vpack.c.b16 %v1447, %v1446
    %v1590 = vpack.c.b16 %v1449, %v1448
    %v1591 = vpack.c.b16 %v1451, %v1450
    %v1592 = vpack.c.b16 %v1453, %v1452
    %v1593 = vpack.c.b16 %v1455, %v1454
    %v1594 = vpack.c.b16 %v1457, %v1456
    %v1595 = vpack.c.b16 %v1459, %v1458
    %v1596 = vpack.c.b16 %v1461, %v1460
    %v1597 = vpack.c.b16 %v1463, %v1462
    %v1598 = vpack.c.b16 %v1465, %v1464
    %v1599 = vpack.c.b16 %v1467, %v1466
    %v1600 = vpack.c.b16 %v1469, %v1468
    %v1601 = vpack.c.b16 %v1471, %v1470
    %v1602 = vpack.c.b16 %v1473, %v1472
    %v1603 = vpack.c.b16 %v1475, %v1474
    %1732 = vmatprep.subr.bf16.mxu0 0
    %1733 = vmatpush1.bf16.msra.mxu0 %v1476
    %1734 = vmatprep.subr.bf16.mxu0 0
    %1735 = vmatpush1.bf16.msra.mxu0 %v1477
    %1736 = vmatprep.subr.bf16.mxu0 0
    %1737 = vmatpush1.bf16.msra.mxu0 %v1478
    %1738 = vmatprep.subr.bf16.mxu0 0
    %1739 = vmatpush1.bf16.msra.mxu0 %v1479
    %1740 = vmatprep.subr.bf16.mxu0 0
    %1741 = vmatpush1.bf16.msra.mxu0 %v1480
    %1742 = vmatprep.subr.bf16.mxu0 0
    %1743 = vmatpush1.bf16.msra.mxu0 %v1481
    %1744 = vmatprep.subr.bf16.mxu0 0
    %1745 = vmatpush1.bf16.msra.mxu0 %v1482
    %1746 = vmatprep.subr.bf16.mxu0 0
    %1747 = vmatpush1.bf16.msra.mxu0 %v1483
    %1748 = vmatprep.subr.bf16.mxu0 0
    %1749 = vmatpush1.bf16.msra.mxu0 %v1484
    %1750 = vmatprep.subr.bf16.mxu0 0
    %1751 = vmatpush1.bf16.msra.mxu0 %v1485
    %1752 = vmatprep.subr.bf16.mxu0 0
    %1753 = vmatpush1.bf16.msra.mxu0 %v1486
    %1754 = vmatprep.subr.bf16.mxu0 0
    %1755 = vmatpush1.bf16.msra.mxu0 %v1487
    %1756 = vmatprep.subr.bf16.mxu0 0
    %1757 = vmatpush1.bf16.msra.mxu0 %v1488
    %1758 = vmatprep.subr.bf16.mxu0 0
    %1759 = vmatpush1.bf16.msra.mxu0 %v1489
    %1760 = vmatprep.subr.bf16.mxu0 0
    %1761 = vmatpush1.bf16.msra.mxu0 %v1490
    %1762 = vmatprep.subr.bf16.mxu0 0
    %1763 = vmatpush1.bf16.msra.mxu0 %v1491
    %1764 = vmatprep.mubr.bf16.mxu0 %v686
    %1765 = vmatmul.mubr.bf16.gmra.mrb[0].mxu0 %v685
    %v1766 = vpop.f32.mrb[0].mxu0
    %v1767 = vadd.f32 %v962, %v1766
    %v1768 = vpop.f32.mrb[0].mxu0
    %v1769 = vpop.f32.mrb[0].mxu0
    %v1770 = vadd.f32 %v962, %v1769
    %v1771 = vpop.f32.mrb[0].mxu0
    %1772 = vdwg.mxu0
    %1773 = vmatprep.subr.bf16.mxu0 0
    %1774 = vmatpush1.bf16.msra.mxu0 %v1492
    %1775 = vmatprep.subr.bf16.mxu0 0
    %1776 = vmatpush1.bf16.msra.mxu0 %v1493
    %1777 = vmatprep.subr.bf16.mxu0 0
    %1778 = vmatpush1.bf16.msra.mxu0 %v1494
    %1779 = vmatprep.subr.bf16.mxu0 0
    %1780 = vmatpush1.bf16.msra.mxu0 %v1495
    %1781 = vmatprep.subr.bf16.mxu0 0
    %1782 = vmatpush1.bf16.msra.mxu0 %v1496
    %1783 = vmatprep.subr.bf16.mxu0 0
    %1784 = vmatpush1.bf16.msra.mxu0 %v1497
    %1785 = vmatprep.subr.bf16.mxu0 0
    %1786 = vmatpush1.bf16.msra.mxu0 %v1498
    %1787 = vmatprep.subr.bf16.mxu0 0
    %1788 = vmatpush1.bf16.msra.mxu0 %v1499
    %1789 = vmatprep.subr.bf16.mxu0 0
    %1790 = vmatpush1.bf16.msra.mxu0 %v1500
    %1791 = vmatprep.subr.bf16.mxu0 0
    %1792 = vmatpush1.bf16.msra.mxu0 %v1501
    %1793 = vmatprep.subr.bf16.mxu0 0
    %1794 = vmatpush1.bf16.msra.mxu0 %v1502
    %1795 = vmatprep.subr.bf16.mxu0 0
    %1796 = vmatpush1.bf16.msra.mxu0 %v1503
    %1797 = vmatprep.subr.bf16.mxu0 0
    %1798 = vmatpush1.bf16.msra.mxu0 %v1504
    %1799 = vmatprep.subr.bf16.mxu0 0
    %1800 = vmatpush1.bf16.msra.mxu0 %v1505
    %1801 = vmatprep.subr.bf16.mxu0 0
    %1802 = vmatpush1.bf16.msra.mxu0 %v1506
    %1803 = vmatprep.subr.bf16.mxu0 0
    %1804 = vmatpush1.bf16.msra.mxu0 %v1507
    %1805 = vmatprep.mubr.bf16.mxu0 %v688
    %1806 = vmatmul.mubr.bf16.gmra.mrb[0].mxu0 %v687
    %v1807 = vpop.f32.mrb[0].mxu0
    %v1808 = vadd.f32 %v1767, %v1807
    %v1809 = vpop.f32.mrb[0].mxu0
    %v1810 = vpop.f32.mrb[0].mxu0
    %v1811 = vadd.f32 %v1770, %v1810
    %v1812 = vpop.f32.mrb[0].mxu0
    %1813 = vdwg.mxu0
    %1814 = vmatprep.subr.bf16.mxu0 0
    %1815 = vmatpush1.bf16.msra.mxu0 %v1508
    %1816 = vmatprep.subr.bf16.mxu0 0
    %1817 = vmatpush1.bf16.msra.mxu0 %v1509
    %1818 = vmatprep.subr.bf16.mxu0 0
    %1819 = vmatpush1.bf16.msra.mxu0 %v1510
    %1820 = vmatprep.subr.bf16.mxu0 0
    %1821 = vmatpush1.bf16.msra.mxu0 %v1511
    %1822 = vmatprep.subr.bf16.mxu0 0
    %1823 = vmatpush1.bf16.msra.mxu0 %v1512
    %1824 = vmatprep.subr.bf16.mxu0 0
    %1825 = vmatpush1.bf16.msra.mxu0 %v1513
    %1826 = vmatprep.subr.bf16.mxu0 0
    %1827 = vmatpush1.bf16.msra.mxu0 %v1514
    %1828 = vmatprep.subr.bf16.mxu0 0
    %1829 = vmatpush1.bf16.msra.mxu0 %v1515
    %1830 = vmatprep.subr.bf16.mxu0 0
    %1831 = vmatpush1.bf16.msra.mxu0 %v1516
    %1832 = vmatprep.subr.bf16.mxu0 0
    %1833 = vmatpush1.bf16.msra.mxu0 %v1517
    %1834 = vmatprep.subr.bf16.mxu0 0
    %1835 = vmatpush1.bf16.msra.mxu0 %v1518
    %1836 = vmatprep.subr.bf16.mxu0 0
    %1837 = vmatpush1.bf16.msra.mxu0 %v1519
    %1838 = vmatprep.subr.bf16.mxu0 0
    %1839 = vmatpush1.bf16.msra.mxu0 %v1520
    %1840 = vmatprep.subr.bf16.mxu0 0
    %1841 = vmatpush1.bf16.msra.mxu0 %v1521
    %1842 = vmatprep.subr.bf16.mxu0 0
    %1843 = vmatpush1.bf16.msra.mxu0 %v1522
    %1844 = vmatprep.subr.bf16.mxu0 0
    %1845 = vmatpush1.bf16.msra.mxu0 %v1523
    %1846 = vmatprep.mubr.bf16.mxu0 %v690
    %1847 = vmatmul.mubr.bf16.gmra.mrb[0].mxu0 %v689
    %v1848 = vpop.f32.mrb[0].mxu0
    %v1849 = vadd.f32 %v1808, %v1848
    %v1850 = vpop.f32.mrb[0].mxu0
    %v1851 = vpop.f32.mrb[0].mxu0
    %v1852 = vadd.f32 %v1811, %v1851
    %v1853 = vpop.f32.mrb[0].mxu0
    %1854 = vdwg.mxu0
    %1855 = vmatprep.subr.bf16.mxu0 0
    %1856 = vmatpush1.bf16.msra.mxu0 %v1524
    %1857 = vmatprep.subr.bf16.mxu0 0
    %1858 = vmatpush1.bf16.msra.mxu0 %v1525
    %1859 = vmatprep.subr.bf16.mxu0 0
    %1860 = vmatpush1.bf16.msra.mxu0 %v1526
    %1861 = vmatprep.subr.bf16.mxu0 0
    %1862 = vmatpush1.bf16.msra.mxu0 %v1527
    %1863 = vmatprep.subr.bf16.mxu0 0
    %1864 = vmatpush1.bf16.msra.mxu0 %v1528
    %1865 = vmatprep.subr.bf16.mxu0 0
    %1866 = vmatpush1.bf16.msra.mxu0 %v1529
    %1867 = vmatprep.subr.bf16.mxu0 0
    %1868 = vmatpush1.bf16.msra.mxu0 %v1530
    %1869 = vmatprep.subr.bf16.mxu0 0
    %1870 = vmatpush1.bf16.msra.mxu0 %v1531
    %1871 = vmatprep.subr.bf16.mxu0 0
    %1872 = vmatpush1.bf16.msra.mxu0 %v1532
    %1873 = vmatprep.subr.bf16.mxu0 0
    %1874 = vmatpush1.bf16.msra.mxu0 %v1533
    %1875 = vmatprep.subr.bf16.mxu0 0
    %1876 = vmatpush1.bf16.msra.mxu0 %v1534
    %1877 = vmatprep.subr.bf16.mxu0 0
    %1878 = vmatpush1.bf16.msra.mxu0 %v1535
    %1879 = vmatprep.subr.bf16.mxu0 0
    %1880 = vmatpush1.bf16.msra.mxu0 %v1536
    %1881 = vmatprep.subr.bf16.mxu0 0
    %1882 = vmatpush1.bf16.msra.mxu0 %v1537
    %1883 = vmatprep.subr.bf16.mxu0 0
    %1884 = vmatpush1.bf16.msra.mxu0 %v1538
    %1885 = vmatprep.subr.bf16.mxu0 0
    %1886 = vmatpush1.bf16.msra.mxu0 %v1539
    %1887 = vmatprep.mubr.bf16.mxu0 %v692
    %1888 = vmatmul.mubr.bf16.gmra.mrb[0].mxu0 %v691
    %v1889 = vpop.f32.mrb[0].mxu0
    %v1890 = vadd.f32 %v1849, %v1889
    %v1891 = vpop.f32.mrb[0].mxu0
    %v1892 = vpop.f32.mrb[0].mxu0
    %v1893 = vadd.f32 %v1852, %v1892
    %v1894 = vpop.f32.mrb[0].mxu0
    %1895 = vdwg.mxu0
    %1896 = vmatprep.subr.bf16.mxu0 0
    %1897 = vmatpush1.bf16.msra.mxu0 %v1540
    %1898 = vmatprep.subr.bf16.mxu0 0
    %1899 = vmatpush1.bf16.msra.mxu0 %v1541
    %1900 = vmatprep.subr.bf16.mxu0 0
    %1901 = vmatpush1.bf16.msra.mxu0 %v1542
    %1902 = vmatprep.subr.bf16.mxu0 0
    %1903 = vmatpush1.bf16.msra.mxu0 %v1543
    %1904 = vmatprep.subr.bf16.mxu0 0
    %1905 = vmatpush1.bf16.msra.mxu0 %v1544
    %1906 = vmatprep.subr.bf16.mxu0 0
    %1907 = vmatpush1.bf16.msra.mxu0 %v1545
    %1908 = vmatprep.subr.bf16.mxu0 0
    %1909 = vmatpush1.bf16.msra.mxu0 %v1546
    %1910 = vmatprep.subr.bf16.mxu0 0
    %1911 = vmatpush1.bf16.msra.mxu0 %v1547
    %1912 = vmatprep.subr.bf16.mxu0 0
    %1913 = vmatpush1.bf16.msra.mxu0 %v1548
    %1914 = vmatprep.subr.bf16.mxu0 0
    %1915 = vmatpush1.bf16.msra.mxu0 %v1549
    %1916 = vmatprep.subr.bf16.mxu0 0
    %1917 = vmatpush1.bf16.msra.mxu0 %v1550
    %1918 = vmatprep.subr.bf16.mxu0 0
    %1919 = vmatpush1.bf16.msra.mxu0 %v1551
    %1920 = vmatprep.subr.bf16.mxu0 0
    %1921 = vmatpush1.bf16.msra.mxu0 %v1552
    %1922 = vmatprep.subr.bf16.mxu0 0
    %1923 = vmatpush1.bf16.msra.mxu0 %v1553
    %1924 = vmatprep.subr.bf16.mxu0 0
    %1925 = vmatpush1.bf16.msra.mxu0 %v1554
    %1926 = vmatprep.subr.bf16.mxu0 0
    %1927 = vmatpush1.bf16.msra.mxu0 %v1555
    %1928 = vmatprep.mubr.bf16.mxu0 %v694
    %1929 = vmatmul.mubr.bf16.gmra.mrb[0].mxu0 %v693
    %v1930 = vpop.f32.mrb[0].mxu0
    %v1931 = vadd.f32 %v1890, %v1930
    %v1932 = vpop.f32.mrb[0].mxu0
    %v1933 = vpop.f32.mrb[0].mxu0
    %v1934 = vadd.f32 %v1893, %v1933
    %v1935 = vpop.f32.mrb[0].mxu0
    %1936 = vdwg.mxu0
    %1937 = vmatprep.subr.bf16.mxu0 0
    %1938 = vmatpush1.bf16.msra.mxu0 %v1556
    %1939 = vmatprep.subr.bf16.mxu0 0
    %1940 = vmatpush1.bf16.msra.mxu0 %v1557
    %1941 = vmatprep.subr.bf16.mxu0 0
    %1942 = vmatpush1.bf16.msra.mxu0 %v1558
    %1943 = vmatprep.subr.bf16.mxu0 0
    %1944 = vmatpush1.bf16.msra.mxu0 %v1559
    %1945 = vmatprep.subr.bf16.mxu0 0
    %1946 = vmatpush1.bf16.msra.mxu0 %v1560
    %1947 = vmatprep.subr.bf16.mxu0 0
    %1948 = vmatpush1.bf16.msra.mxu0 %v1561
    %1949 = vmatprep.subr.bf16.mxu0 0
    %1950 = vmatpush1.bf16.msra.mxu0 %v1562
    %1951 = vmatprep.subr.bf16.mxu0 0
    %1952 = vmatpush1.bf16.msra.mxu0 %v1563
    %1953 = vmatprep.subr.bf16.mxu0 0
    %1954 = vmatpush1.bf16.msra.mxu0 %v1564
    %1955 = vmatprep.subr.bf16.mxu0 0
    %1956 = vmatpush1.bf16.msra.mxu0 %v1565
    %1957 = vmatprep.subr.bf16.mxu0 0
    %1958 = vmatpush1.bf16.msra.mxu0 %v1566
    %1959 = vmatprep.subr.bf16.mxu0 0
    %1960 = vmatpush1.bf16.msra.mxu0 %v1567
    %1961 = vmatprep.subr.bf16.mxu0 0
    %1962 = vmatpush1.bf16.msra.mxu0 %v1568
    %1963 = vmatprep.subr.bf16.mxu0 0
    %1964 = vmatpush1.bf16.msra.mxu0 %v1569
    %1965 = vmatprep.subr.bf16.mxu0 0
    %1966 = vmatpush1.bf16.msra.mxu0 %v1570
    %1967 = vmatprep.subr.bf16.mxu0 0
    %1968 = vmatpush1.bf16.msra.mxu0 %v1571
    %1969 = vmatprep.mubr.bf16.mxu0 %v696
    %1970 = vmatmul.mubr.bf16.gmra.mrb[0].mxu0 %v695
    %v1971 = vpop.f32.mrb[0].mxu0
    %v1972 = vadd.f32 %v1931, %v1971
    %v1973 = vpop.f32.mrb[0].mxu0
    %v1974 = vpop.f32.mrb[0].mxu0
    %v1975 = vadd.f32 %v1934, %v1974
    %v1976 = vpop.f32.mrb[0].mxu0
    %1977 = vdwg.mxu0
    %1978 = vmatprep.subr.bf16.mxu0 0
    %1979 = vmatpush1.bf16.msra.mxu0 %v1572
    %1980 = vmatprep.subr.bf16.mxu0 0
    %1981 = vmatpush1.bf16.msra.mxu0 %v1573
    %1982 = vmatprep.subr.bf16.mxu0 0
    %1983 = vmatpush1.bf16.msra.mxu0 %v1574
    %1984 = vmatprep.subr.bf16.mxu0 0
    %1985 = vmatpush1.bf16.msra.mxu0 %v1575
    %1986 = vmatprep.subr.bf16.mxu0 0
    %1987 = vmatpush1.bf16.msra.mxu0 %v1576
    %1988 = vmatprep.subr.bf16.mxu0 0
    %1989 = vmatpush1.bf16.msra.mxu0 %v1577
    %1990 = vmatprep.subr.bf16.mxu0 0
    %1991 = vmatpush1.bf16.msra.mxu0 %v1578
    %1992 = vmatprep.subr.bf16.mxu0 0
    %1993 = vmatpush1.bf16.msra.mxu0 %v1579
    %1994 = vmatprep.subr.bf16.mxu0 0
    %1995 = vmatpush1.bf16.msra.mxu0 %v1580
    %1996 = vmatprep.subr.bf16.mxu0 0
    %1997 = vmatpush1.bf16.msra.mxu0 %v1581
    %1998 = vmatprep.subr.bf16.mxu0 0
    %1999 = vmatpush1.bf16.msra.mxu0 %v1582
    %2000 = vmatprep.subr.bf16.mxu0 0
    %2001 = vmatpush1.bf16.msra.mxu0 %v1583
    %2002 = vmatprep.subr.bf16.mxu0 0
    %2003 = vmatpush1.bf16.msra.mxu0 %v1584
    %2004 = vmatprep.subr.bf16.mxu0 0
    %2005 = vmatpush1.bf16.msra.mxu0 %v1585
    %2006 = vmatprep.subr.bf16.mxu0 0
    %2007 = vmatpush1.bf16.msra.mxu0 %v1586
    %2008 = vmatprep.subr.bf16.mxu0 0
    %2009 = vmatpush1.bf16.msra.mxu0 %v1587
    %2010 = vmatprep.mubr.bf16.mxu0 %v698
    %2011 = vmatmul.mubr.bf16.gmra.mrb[0].mxu0 %v697
    %v2012 = vpop.f32.mrb[0].mxu0
    %v2013 = vadd.f32 %v1972, %v2012
    %v2014 = vpop.f32.mrb[0].mxu0
    %v2015 = vpop.f32.mrb[0].mxu0
    %v2016 = vadd.f32 %v1975, %v2015
    %v2017 = vpop.f32.mrb[0].mxu0
    %2018 = vdwg.mxu0
    %2019 = vmatprep.subr.bf16.mxu0 0
    %2020 = vmatpush1.bf16.msra.mxu0 %v1588
    %2021 = vmatprep.subr.bf16.mxu0 0
    %2022 = vmatpush1.bf16.msra.mxu0 %v1589
    %2023 = vmatprep.subr.bf16.mxu0 0
    %2024 = vmatpush1.bf16.msra.mxu0 %v1590
    %2025 = vmatprep.subr.bf16.mxu0 0
    %2026 = vmatpush1.bf16.msra.mxu0 %v1591
    %2027 = vmatprep.subr.bf16.mxu0 0
    %2028 = vmatpush1.bf16.msra.mxu0 %v1592
    %2029 = vmatprep.subr.bf16.mxu0 0
    %2030 = vmatpush1.bf16.msra.mxu0 %v1593
    %2031 = vmatprep.subr.bf16.mxu0 0
    %2032 = vmatpush1.bf16.msra.mxu0 %v1594
    %2033 = vmatprep.subr.bf16.mxu0 0
    %2034 = vmatpush1.bf16.msra.mxu0 %v1595
    %2035 = vmatprep.subr.bf16.mxu0 0
    %2036 = vmatpush1.bf16.msra.mxu0 %v1596
    %2037 = vmatprep.subr.bf16.mxu0 0
    %2038 = vmatpush1.bf16.msra.mxu0 %v1597
    %2039 = vmatprep.subr.bf16.mxu0 0
    %2040 = vmatpush1.bf16.msra.mxu0 %v1598
    %2041 = vmatprep.subr.bf16.mxu0 0
    %2042 = vmatpush1.bf16.msra.mxu0 %v1599
    %2043 = vmatprep.subr.bf16.mxu0 0
    %2044 = vmatpush1.bf16.msra.mxu0 %v1600
    %2045 = vmatprep.subr.bf16.mxu0 0
    %2046 = vmatpush1.bf16.msra.mxu0 %v1601
    %2047 = vmatprep.subr.bf16.mxu0 0
    %2048 = vmatpush1.bf16.msra.mxu0 %v1602
    %2049 = vmatprep.subr.bf16.mxu0 0
    %2050 = vmatpush1.bf16.msra.mxu0 %v1603
    %2051 = vmatprep.mubr.bf16.mxu0 %v700
    %2052 = vmatmul.mubr.bf16.gmra.mrb[0].mxu0 %v699
    %v2053 = vpop.f32.mrb[0].mxu0
    %v2054 = vadd.f32 %v2013, %v2053
    %v2055 = vpop.f32.mrb[0].mxu0
    %v2056 = vpop.f32.mrb[0].mxu0
    %v2057 = vadd.f32 %v2016, %v2056
    %v2058 = vpop.f32.mrb[0].mxu0
    %2059 = vdwg.mxu0
    %2060 = vst.msk [vmem:[#allocation2] sm:$0xff] %vm305, %v2054
    %2061 = vst.msk [vmem:[#allocation2 + $0x8] sm:$0xff] %vm305, %v2057
    // Predicated region
    $region22: #{tpu_custom_call.1} parent=1 // pred_check
      _
    $region23: #{tpu_custom_call.1} parent=1 // pred_check_branch
      %2063 = sbr.rel (0) target = $region25
    $region24: #{tpu_custom_call.1} parent=1 // pred_region
      %s2065 = ssub.s32 256, 256
      %2066 = vsyncadd [#allocation3], %s2065
      %s2067 = sshll.u32 [#allocation2], 4
      %s2068 = int_to_ptr.vmem [resolvable:$true] %s2067
      %2073 = dma.vmem_to_hbm [thread:$0]  %s2068, 256, %s5, [#allocation3], 128, 128, 8
    $region25: #{tpu_custom_call.1} parent=1 // pred_fallthru
      _
    // Predicated region
    $region26: #{tpu_custom_call.1} parent=1 // pred_check
      _
    $region27: #{tpu_custom_call.1} parent=1 // pred_check_branch
      %2075 = sbr.rel (0) target = $region29
    $region28: #{tpu_custom_call.1} parent=1 // pred_region
      %2076 = dma.done [#allocation3], 256
    $region29: #{tpu_custom_call.1} parent=1 // pred_fallthru
      _
    %2077 = vsyncpa [#allocation3], 1

</llo_original>
